<compile_context>
chip_gen: v7x
topology: tpu7x:2x2x1
jax: 0.10.0
libtpu: 0.0.40
codegen_flags: <defaults>
</compile_context>

<pallas_src>
import functools
import jax
import jax.numpy as jnp
from jax.experimental import pallas as pl
from jax.experimental.pallas import tpu as pltpu


def _round_up(x, m):
    return (x + m - 1) // m * m


def decoder_kernel(n_blocks,
                   net0_ref, c_ref,
                   w0_ref, b0_ref,
                   w1_ref, b1_ref,
                   wo_ref, bo_ref,
                   out_ref):
    """One (point-tile, batch) grid step on a lane-dense (H, TILE_N) activation."""
    mm_dtype = w0_ref.dtype            # bf16 (default) or f32; weights pre-cast in wrapper

    def dot(w, x):
        # w already in mm_dtype; only the freshly-computed activation needs a cast.
        return jnp.dot(w, x.astype(mm_dtype), preferred_element_type=jnp.float32)

    # residual stream stays f32
    net = net0_ref[...].astype(jnp.float32)            # (H, TILE_N) == fc_p(pcl_norm)^T

    for i in range(n_blocks):                          # static unroll, n_blocks small
        net = net + c_ref[i]                           # + fc_c[i](featmap): (H,TILE_N)+(H,1)
        # ResnetBlockFC(hidden): x + fc_1(relu(fc_0(relu(x)))), no shortcut
        h0 = dot(w0_ref[i], jnp.maximum(net, 0.0)) + b0_ref[i]
        dx = dot(w1_ref[i], jnp.maximum(h0, 0.0)) + b1_ref[i]
        net = net + dx

    # out = fc_out(relu(net)) -> (OUT, TILE_N), lane-dense store.
    # M=1 MXU dot accepted as-is per perf review (only ~1/11 of total MXU work).
    out = dot(wo_ref[...], jnp.maximum(net, 0.0)) + bo_ref[...]
    out_ref[...] = out.astype(out_ref.dtype)


def build_pcl_norm(resolution):
    """Reproduces build_grid2D_imp + the scaling done in __init__/forward.
    NOTE: both axes are scaled/normalized by resolution[0], mirroring the
    original PyTorch module (intentional even for non-square resolutions)."""
    R0, R1 = resolution
    ranges = [jnp.linspace(0.0, 1.0, r) for r in resolution]
    grid = jnp.stack(jnp.meshgrid(*ranges, indexing="ij"), axis=-1)     # (R0, R1, 2)
    grid = grid.reshape(R0 * R1, 2).astype(jnp.float32) * (R0 - 1)      # xyz_grid
    return grid / R0 - 0.5                                              # (N, 2) pcl_norm


def implicit_mlp_2d_decoder(featmap, params, resolution, tile_n=8192, use_bf16=True):
    B, C = featmap.shape
    R0, R1 = resolution
    N = R0 * R1

    wp, bp = params["wp"], params["bp"]          # (2, H), (1, H)
    wc, bc = params["wc"], params["bc"]          # (NB, C, H), (NB, 1, H)
    w0, b0 = params["w0"], params["b0"]          # (NB, H, H), (NB, 1, H)
    w1, b1 = params["w1"], params["b1"]          # (NB, H, H), (NB, 1, H)
    wo, bo = params["wo"], params["bo"]          # (H, OUT), (1, OUT)
    NB, _, H = wc.shape
    OUT = wo.shape[1]

    mm_dtype = jnp.bfloat16 if use_bf16 else jnp.float32
    mm_bytes = 2 if use_bf16 else 4

    # Effective point-tile: clamp to the (128-aligned) problem size and pad N.
    tile_n = min(tile_n, _round_up(N, 128))
    n_pad = _round_up(N, tile_n)
    n_tiles = n_pad // tile_n

    # ---- hoisted degenerate-shape matmuls (done once in the wrapper) -------
    pcl_norm = build_pcl_norm(resolution)                          # (N, 2), batch-indep.
    net0 = (pcl_norm @ wp + bp).T                                  # fc_p -> (H, N), f32
    net0 = jnp.pad(net0, ((0, 0), (0, n_pad - N))).astype(mm_dtype)  # (H, n_pad)
    c_all = jnp.einsum("bc,kch->bkh", featmap.astype(jnp.float32), wc) + bc[:, 0, :][None]
    c_all = c_all.reshape(B, NB, H, 1)                             # fc_c -> (B, NB, H, 1), f32

    # Weights in (out, in) layout, pre-cast to mm_dtype so in-kernel matmuls are
    # W @ act with act=(H,TILE_N); biases stay f32.
    w0t = jnp.transpose(w0, (0, 2, 1)).astype(mm_dtype)   # (NB, H, H)
    b0t = jnp.transpose(b0, (0, 2, 1))                     # (NB, H, 1)
    w1t = jnp.transpose(w1, (0, 2, 1)).astype(mm_dtype)   # (NB, H, H)
    b1t = jnp.transpose(b1, (0, 2, 1))                     # (NB, H, 1)
    wot = wo.T.astype(mm_dtype)                            # (OUT, H)
    bot = bo.T                                             # (OUT, 1)

    kernel = functools.partial(decoder_kernel, NB)

    # ---- advisory cost estimate (net0 read once thanks to batch-innermost grid)
    flops = 2 * B * n_pad * (NB * 2 * H * H + H * OUT)
    bytes_accessed = (H * n_pad * mm_bytes                         # net0, fetched once
                      + n_tiles * B * NB * H * 4                   # fc_c(featmap) per step
                      + NB * 2 * (H * H * mm_bytes + H * 4)        # block weights + biases
                      + OUT * (H * mm_bytes + 4)                   # fc_out
                      + B * OUT * n_pad * 4)                       # output writes

    # ---- per-call VMEM budget (safe on v7x's 64 MiB as well as v5e/v6e's 128 MiB)
    weight_bytes = (2 * NB * H * H + OUT * H) * mm_bytes + (2 * NB * H + OUT) * 4
    vmem_est = (2 * H * tile_n * mm_bytes        # net0 block, double-buffered
                + 2 * OUT * tile_n * 4           # output block, double-buffered
                + 2 * NB * H * 4                 # fc_c block (tiny)
                + weight_bytes                   # single-buffered (pl.Buffered(1))
                + 8 * H * tile_n * 4)            # in-kernel f32 temporaries / spills
    vmem_limit = int(min(max(2 * vmem_est, 32 << 20), 48 << 20))

    # Constant-operand specs: index maps never change -> single buffer.
    const_buf = pl.Buffered(1)

    out = pl.pallas_call(
        kernel,
        out_shape=jax.ShapeDtypeStruct((B, OUT, n_pad), jnp.float32),
        grid_spec=pltpu.PrefetchScalarGridSpec(
            num_scalar_prefetch=0,
            # batch innermost: net0's block index is constant across the inner
            # loop, so it is DMA'd once instead of B times; the (larger) tile
            # axis leads, which shards evenly across v7x's 2 TensorCores.
            grid=(n_tiles, B),
            in_specs=[
                pl.BlockSpec((H, tile_n), lambda n, b: (0, n)),              # net0 (fc_p)
                pl.BlockSpec((None, NB, H, 1), lambda n, b: (b, 0, 0, 0)),   # fc_c(featmap)
                pl.BlockSpec((NB, H, H), lambda n, b: (0, 0, 0),
                             pipeline_mode=const_buf),                       # fc_0 W
                pl.BlockSpec((NB, H, 1), lambda n, b: (0, 0, 0),
                             pipeline_mode=const_buf),                       # fc_0 b
                pl.BlockSpec((NB, H, H), lambda n, b: (0, 0, 0),
                             pipeline_mode=const_buf),                       # fc_1 W
                pl.BlockSpec((NB, H, 1), lambda n, b: (0, 0, 0),
                             pipeline_mode=const_buf),                       # fc_1 b
                pl.BlockSpec((OUT, H), lambda n, b: (0, 0),
                             pipeline_mode=const_buf),                       # fc_out W
                pl.BlockSpec((OUT, 1), lambda n, b: (0, 0),
                             pipeline_mode=const_buf),                       # fc_out b
            ],
            out_specs=pl.BlockSpec((None, OUT, tile_n), lambda n, b: (b, 0, n)),
        ),
        compiler_params=pltpu.CompilerParams(
            dimension_semantics=("parallel", "parallel"),
            vmem_limit_bytes=vmem_limit),
        cost_estimate=pl.CostEstimate(flops=flops, transcendentals=0,
                                      bytes_accessed=bytes_accessed),
    )(net0, c_all, w0t, b0t, w1t, b1t, wot, bot)

    # output is already (B, OUT, N): matches permute(0,2,1)+reshape of PyTorch
    return out[:, :, :N].reshape(B, OUT, R0, R1)


def reference(featmap, params, resolution):
    """Pure-JAX mirror of the PyTorch forward (row-major, for correctness check)."""
    B, C = featmap.shape
    R0, R1 = resolution
    pcl_norm = jnp.broadcast_to(build_pcl_norm(resolution)[None], (B, R0 * R1, 2))
    net = pcl_norm @ params["wp"] + params["bp"]                      # fc_p
    c = jnp.broadcast_to(featmap[:, None, :], (B, R0 * R1, C))
    NB = params["wc"].shape[0]
    for i in range(NB):
        net = net + (c @ params["wc"][i] + params["bc"][i])
        h = jnp.maximum(net, 0.0)
        h0 = h @ params["w0"][i] + params["b0"][i]
        dx = jnp.maximum(h0, 0.0) @ params["w1"][i] + params["b1"][i]
        net = net + dx
    out = jnp.maximum(net, 0.0) @ params["wo"] + params["bo"]
    OUT = params["wo"].shape[1]
    return jnp.transpose(out, (0, 2, 1)).reshape(B, OUT, R0, R1)


def init_params(key, dim, c_dim, hidden, n_blocks, out_dim):
    """Deterministic synthetic init (PyTorch Linear shapes, stored as (in, out)).
    NOTE: the original module zero-inits fc_1.weight; we use random weights so
    the numeric check is non-trivial — forward semantics are unchanged."""
    def lin(k, fan_in, fan_out):
        k1, k2 = jax.random.split(k)
        bound = 1.0 / jnp.sqrt(fan_in)
        w = jax.random.uniform(k1, (fan_in, fan_out), jnp.float32, -bound, bound)
        b = jax.random.uniform(k2, (1, fan_out), jnp.float32, -bound, bound)
        return w, b

    keys = jax.random.split(key, 2 + 3 * n_blocks)
    wp, bp = lin(keys[0], dim, hidden)
    wo, bo = lin(keys[1], hidden, out_dim)
    wc, bc, w0, b0, w1, b1 = [], [], [], [], [], []
    for i in range(n_blocks):
        w, b = lin(keys[2 + 3 * i], c_dim, hidden);  wc.append(w); bc.append(b)
        w, b = lin(keys[3 + 3 * i], hidden, hidden); w0.append(w); b0.append(b)
        w, b = lin(keys[4 + 3 * i], hidden, hidden); w1.append(w); b1.append(b)
    return {
        "wp": wp, "bp": bp,
        "wc": jnp.stack(wc), "bc": jnp.stack(bc),
        "w0": jnp.stack(w0), "b0": jnp.stack(b0),
        "w1": jnp.stack(w1), "b1": jnp.stack(b1),
        "wo": wo, "bo": bo,
    }


if __name__ == "__main__":
    # small shapes: dim=2, c_dim=64, hidden=32, n_blocks=5, out_dim=1, res=(16,16)
    DIM, C_DIM, HIDDEN, N_BLOCKS, OUT_DIM = 2, 64, 32, 5, 1
    RESOLUTION = (16, 16)
    B = 2

    key = jax.random.PRNGKey(0)
    k_feat, k_param = jax.random.split(key)
    featmap = jax.random.normal(k_feat, (B, C_DIM), jnp.float32)
    params = init_params(k_param, DIM, C_DIM, HIDDEN, N_BLOCKS, OUT_DIM)

    ref = jax.block_until_ready(reference(featmap, params, RESOLUTION))

    # perf-default path: bf16 MXU inputs, f32 accumulation (looser tolerance)
    out_bf16 = jax.block_until_ready(
        implicit_mlp_2d_decoder(featmap, params, RESOLUTION))
    # strict-precision path: pure f32, proves exact forward semantics
    out_f32 = jax.block_until_ready(
        implicit_mlp_2d_decoder(featmap, params, RESOLUTION, use_bf16=False))

    assert out_bf16.shape == (B, OUT_DIM, RESOLUTION[0], RESOLUTION[1])
    assert out_f32.shape == (B, OUT_DIM, RESOLUTION[0], RESOLUTION[1])
    assert jnp.allclose(out_f32, ref, atol=1e-4, rtol=1e-4), "f32 mismatch vs reference"
    assert jnp.allclose(out_bf16, ref, atol=5e-2, rtol=5e-2), "bf16 mismatch vs reference"
    print("KERNEL_OK")
</pallas_src>

<mosaic_0001>
module attributes {stable_mosaic.version = 11 : i64} {
  func.func @decoder_kernel(%arg0: i32, %arg1: i32, %arg2: memref<32x256xbf16, #tpu.memory_space<vmem>>, %arg3: memref<1x5x32x1xf32, #tpu.memory_space<vmem>>, %arg4: memref<5x32x32xbf16, #tpu.memory_space<vmem>>, %arg5: memref<5x32x1xf32, #tpu.memory_space<vmem>>, %arg6: memref<5x32x32xbf16, #tpu.memory_space<vmem>>, %arg7: memref<5x32x1xf32, #tpu.memory_space<vmem>>, %arg8: memref<1x32xbf16, #tpu.memory_space<vmem>>, %arg9: memref<1x1xf32, #tpu.memory_space<vmem>>, %arg10: memref<1x1x256xf32, #tpu.memory_space<vmem>>) attributes {dimension_semantics = [#tpu.dimension_semantics<parallel>, #tpu.dimension_semantics<parallel>], iteration_bounds = array<i64: 1, 2>, scalar_prefetch = 0 : i64, scratch_operands = 0 : i64, tpu.core_type = #tpu.core_type<tc>, window_params = [{transform_indices = @transform_0, window_bounds = array<i64: 32, 256>}, {transform_indices = @transform_1, window_bounds = array<i64: 1, 5, 32, 1>}, {pipeline_mode = #tpu.pipeline_mode<synchronous>, transform_indices = @transform_2, window_bounds = array<i64: 5, 32, 32>}, {pipeline_mode = #tpu.pipeline_mode<synchronous>, transform_indices = @transform_3, window_bounds = array<i64: 5, 32, 1>}, {pipeline_mode = #tpu.pipeline_mode<synchronous>, transform_indices = @transform_4, window_bounds = array<i64: 5, 32, 32>}, {pipeline_mode = #tpu.pipeline_mode<synchronous>, transform_indices = @transform_5, window_bounds = array<i64: 5, 32, 1>}, {pipeline_mode = #tpu.pipeline_mode<synchronous>, transform_indices = @transform_6, window_bounds = array<i64: 1, 32>}, {pipeline_mode = #tpu.pipeline_mode<synchronous>, transform_indices = @transform_7, window_bounds = array<i64: 1, 1>}, {transform_indices = @transform_8, window_bounds = array<i64: 1, 1, 256>}]} {
    %c0 = arith.constant 0 : index
    %c0_0 = arith.constant 0 : index
    %0 = vector.load %arg2[%c0, %c0_0] : memref<32x256xbf16, #tpu.memory_space<vmem>>, vector<32x256xbf16>
    %1 = arith.extf %0 : vector<32x256xbf16> to vector<32x256xf32>
    %c0_1 = arith.constant 0 : index
    %c0_2 = arith.constant 0 : index
    %c0_3 = arith.constant 0 : index
    %c0_4 = arith.constant 0 : index
    %2 = vector.load %arg3[%c0_1, %c0_2, %c0_3, %c0_4] : memref<1x5x32x1xf32, #tpu.memory_space<vmem>>, vector<1x1x32x1xf32>
    %3 = vector.shape_cast %2 : vector<1x1x32x1xf32> to vector<32x1xf32>
    %4 = vector.broadcast %3 : vector<32x1xf32> to vector<32x256xf32>
    %5 = arith.addf %1, %4 : vector<32x256xf32>
    %c0_5 = arith.constant 0 : index
    %c0_6 = arith.constant 0 : index
    %c0_7 = arith.constant 0 : index
    %6 = vector.load %arg4[%c0_5, %c0_6, %c0_7] : memref<5x32x32xbf16, #tpu.memory_space<vmem>>, vector<1x32x32xbf16>
    %7 = vector.shape_cast %6 : vector<1x32x32xbf16> to vector<32x32xbf16>
    %cst = arith.constant 0.000000e+00 : f32
    %8 = vector.broadcast %cst : f32 to vector<32x256xf32>
    %9 = arith.maximumf %5, %8 : vector<32x256xf32>
    %10 = arith.truncf %9 : vector<32x256xf32> to vector<32x256xbf16>
    %cst_8 = arith.constant dense<0.000000e+00> : vector<32x256xf32>
    %11 = tpu.matmul %7, %10, %cst_8 {dimension_numbers = #tpu.dot_dimension_numbers<[1], [0], [0], [1], [0, 0, 1, 1], [], []>} : vector<32x32xbf16>, vector<32x256xbf16>, vector<32x256xf32> -> vector<32x256xf32>
    %c0_9 = arith.constant 0 : index
    %c0_10 = arith.constant 0 : index
    %c0_11 = arith.constant 0 : index
    %12 = vector.load %arg5[%c0_9, %c0_10, %c0_11] : memref<5x32x1xf32, #tpu.memory_space<vmem>>, vector<1x32x1xf32>
    %13 = vector.shape_cast %12 : vector<1x32x1xf32> to vector<32x1xf32>
    %14 = vector.broadcast %13 : vector<32x1xf32> to vector<32x256xf32>
    %15 = arith.addf %11, %14 : vector<32x256xf32>
    %c0_12 = arith.constant 0 : index
    %c0_13 = arith.constant 0 : index
    %c0_14 = arith.constant 0 : index
    %16 = vector.load %arg6[%c0_12, %c0_13, %c0_14] : memref<5x32x32xbf16, #tpu.memory_space<vmem>>, vector<1x32x32xbf16>
    %17 = vector.shape_cast %16 : vector<1x32x32xbf16> to vector<32x32xbf16>
    %cst_15 = arith.constant 0.000000e+00 : f32
    %18 = vector.broadcast %cst_15 : f32 to vector<32x256xf32>
    %19 = arith.maximumf %15, %18 : vector<32x256xf32>
    %20 = arith.truncf %19 : vector<32x256xf32> to vector<32x256xbf16>
    %cst_16 = arith.constant dense<0.000000e+00> : vector<32x256xf32>
    %21 = tpu.matmul %17, %20, %cst_16 {dimension_numbers = #tpu.dot_dimension_numbers<[1], [0], [0], [1], [0, 0, 1, 1], [], []>} : vector<32x32xbf16>, vector<32x256xbf16>, vector<32x256xf32> -> vector<32x256xf32>
    %c0_17 = arith.constant 0 : index
    %c0_18 = arith.constant 0 : index
    %c0_19 = arith.constant 0 : index
    %22 = vector.load %arg7[%c0_17, %c0_18, %c0_19] : memref<5x32x1xf32, #tpu.memory_space<vmem>>, vector<1x32x1xf32>
    %23 = vector.shape_cast %22 : vector<1x32x1xf32> to vector<32x1xf32>
    %24 = vector.broadcast %23 : vector<32x1xf32> to vector<32x256xf32>
    %25 = arith.addf %21, %24 : vector<32x256xf32>
    %26 = arith.addf %5, %25 : vector<32x256xf32>
    %c0_20 = arith.constant 0 : index
    %c1 = arith.constant 1 : index
    %c0_21 = arith.constant 0 : index
    %c0_22 = arith.constant 0 : index
    %27 = vector.load %arg3[%c0_20, %c1, %c0_21, %c0_22] : memref<1x5x32x1xf32, #tpu.memory_space<vmem>>, vector<1x1x32x1xf32>
    %28 = vector.shape_cast %27 : vector<1x1x32x1xf32> to vector<32x1xf32>
    %29 = vector.broadcast %28 : vector<32x1xf32> to vector<32x256xf32>
    %30 = arith.addf %26, %29 : vector<32x256xf32>
    %c1_23 = arith.constant 1 : index
    %c0_24 = arith.constant 0 : index
    %c0_25 = arith.constant 0 : index
    %31 = vector.load %arg4[%c1_23, %c0_24, %c0_25] : memref<5x32x32xbf16, #tpu.memory_space<vmem>>, vector<1x32x32xbf16>
    %32 = vector.shape_cast %31 : vector<1x32x32xbf16> to vector<32x32xbf16>
    %cst_26 = arith.constant 0.000000e+00 : f32
    %33 = vector.broadcast %cst_26 : f32 to vector<32x256xf32>
    %34 = arith.maximumf %30, %33 : vector<32x256xf32>
    %35 = arith.truncf %34 : vector<32x256xf32> to vector<32x256xbf16>
    %cst_27 = arith.constant dense<0.000000e+00> : vector<32x256xf32>
    %36 = tpu.matmul %32, %35, %cst_27 {dimension_numbers = #tpu.dot_dimension_numbers<[1], [0], [0], [1], [0, 0, 1, 1], [], []>} : vector<32x32xbf16>, vector<32x256xbf16>, vector<32x256xf32> -> vector<32x256xf32>
    %c1_28 = arith.constant 1 : index
    %c0_29 = arith.constant 0 : index
    %c0_30 = arith.constant 0 : index
    %37 = vector.load %arg5[%c1_28, %c0_29, %c0_30] : memref<5x32x1xf32, #tpu.memory_space<vmem>>, vector<1x32x1xf32>
    %38 = vector.shape_cast %37 : vector<1x32x1xf32> to vector<32x1xf32>
    %39 = vector.broadcast %38 : vector<32x1xf32> to vector<32x256xf32>
    %40 = arith.addf %36, %39 : vector<32x256xf32>
    %c1_31 = arith.constant 1 : index
    %c0_32 = arith.constant 0 : index
    %c0_33 = arith.constant 0 : index
    %41 = vector.load %arg6[%c1_31, %c0_32, %c0_33] : memref<5x32x32xbf16, #tpu.memory_space<vmem>>, vector<1x32x32xbf16>
    %42 = vector.shape_cast %41 : vector<1x32x32xbf16> to vector<32x32xbf16>
    %cst_34 = arith.constant 0.000000e+00 : f32
    %43 = vector.broadcast %cst_34 : f32 to vector<32x256xf32>
    %44 = arith.maximumf %40, %43 : vector<32x256xf32>
    %45 = arith.truncf %44 : vector<32x256xf32> to vector<32x256xbf16>
    %cst_35 = arith.constant dense<0.000000e+00> : vector<32x256xf32>
    %46 = tpu.matmul %42, %45, %cst_35 {dimension_numbers = #tpu.dot_dimension_numbers<[1], [0], [0], [1], [0, 0, 1, 1], [], []>} : vector<32x32xbf16>, vector<32x256xbf16>, vector<32x256xf32> -> vector<32x256xf32>
    %c1_36 = arith.constant 1 : index
    %c0_37 = arith.constant 0 : index
    %c0_38 = arith.constant 0 : index
    %47 = vector.load %arg7[%c1_36, %c0_37, %c0_38] : memref<5x32x1xf32, #tpu.memory_space<vmem>>, vector<1x32x1xf32>
    %48 = vector.shape_cast %47 : vector<1x32x1xf32> to vector<32x1xf32>
    %49 = vector.broadcast %48 : vector<32x1xf32> to vector<32x256xf32>
    %50 = arith.addf %46, %49 : vector<32x256xf32>
    %51 = arith.addf %30, %50 : vector<32x256xf32>
    %c0_39 = arith.constant 0 : index
    %c2 = arith.constant 2 : index
    %c0_40 = arith.constant 0 : index
    %c0_41 = arith.constant 0 : index
    %52 = vector.load %arg3[%c0_39, %c2, %c0_40, %c0_41] : memref<1x5x32x1xf32, #tpu.memory_space<vmem>>, vector<1x1x32x1xf32>
    %53 = vector.shape_cast %52 : vector<1x1x32x1xf32> to vector<32x1xf32>
    %54 = vector.broadcast %53 : vector<32x1xf32> to vector<32x256xf32>
    %55 = arith.addf %51, %54 : vector<32x256xf32>
    %c2_42 = arith.constant 2 : index
    %c0_43 = arith.constant 0 : index
    %c0_44 = arith.constant 0 : index
    %56 = vector.load %arg4[%c2_42, %c0_43, %c0_44] : memref<5x32x32xbf16, #tpu.memory_space<vmem>>, vector<1x32x32xbf16>
    %57 = vector.shape_cast %56 : vector<1x32x32xbf16> to vector<32x32xbf16>
    %cst_45 = arith.constant 0.000000e+00 : f32
    %58 = vector.broadcast %cst_45 : f32 to vector<32x256xf32>
    %59 = arith.maximumf %55, %58 : vector<32x256xf32>
    %60 = arith.truncf %59 : vector<32x256xf32> to vector<32x256xbf16>
    %cst_46 = arith.constant dense<0.000000e+00> : vector<32x256xf32>
    %61 = tpu.matmul %57, %60, %cst_46 {dimension_numbers = #tpu.dot_dimension_numbers<[1], [0], [0], [1], [0, 0, 1, 1], [], []>} : vector<32x32xbf16>, vector<32x256xbf16>, vector<32x256xf32> -> vector<32x256xf32>
    %c2_47 = arith.constant 2 : index
    %c0_48 = arith.constant 0 : index
    %c0_49 = arith.constant 0 : index
    %62 = vector.load %arg5[%c2_47, %c0_48, %c0_49] : memref<5x32x1xf32, #tpu.memory_space<vmem>>, vector<1x32x1xf32>
    %63 = vector.shape_cast %62 : vector<1x32x1xf32> to vector<32x1xf32>
    %64 = vector.broadcast %63 : vector<32x1xf32> to vector<32x256xf32>
    %65 = arith.addf %61, %64 : vector<32x256xf32>
    %c2_50 = arith.constant 2 : index
    %c0_51 = arith.constant 0 : index
    %c0_52 = arith.constant 0 : index
    %66 = vector.load %arg6[%c2_50, %c0_51, %c0_52] : memref<5x32x32xbf16, #tpu.memory_space<vmem>>, vector<1x32x32xbf16>
    %67 = vector.shape_cast %66 : vector<1x32x32xbf16> to vector<32x32xbf16>
    %cst_53 = arith.constant 0.000000e+00 : f32
    %68 = vector.broadcast %cst_53 : f32 to vector<32x256xf32>
    %69 = arith.maximumf %65, %68 : vector<32x256xf32>
    %70 = arith.truncf %69 : vector<32x256xf32> to vector<32x256xbf16>
    %cst_54 = arith.constant dense<0.000000e+00> : vector<32x256xf32>
    %71 = tpu.matmul %67, %70, %cst_54 {dimension_numbers = #tpu.dot_dimension_numbers<[1], [0], [0], [1], [0, 0, 1, 1], [], []>} : vector<32x32xbf16>, vector<32x256xbf16>, vector<32x256xf32> -> vector<32x256xf32>
    %c2_55 = arith.constant 2 : index
    %c0_56 = arith.constant 0 : index
    %c0_57 = arith.constant 0 : index
    %72 = vector.load %arg7[%c2_55, %c0_56, %c0_57] : memref<5x32x1xf32, #tpu.memory_space<vmem>>, vector<1x32x1xf32>
    %73 = vector.shape_cast %72 : vector<1x32x1xf32> to vector<32x1xf32>
    %74 = vector.broadcast %73 : vector<32x1xf32> to vector<32x256xf32>
    %75 = arith.addf %71, %74 : vector<32x256xf32>
    %76 = arith.addf %55, %75 : vector<32x256xf32>
    %c0_58 = arith.constant 0 : index
    %c3 = arith.constant 3 : index
    %c0_59 = arith.constant 0 : index
    %c0_60 = arith.constant 0 : index
    %77 = vector.load %arg3[%c0_58, %c3, %c0_59, %c0_60] : memref<1x5x32x1xf32, #tpu.memory_space<vmem>>, vector<1x1x32x1xf32>
    %78 = vector.shape_cast %77 : vector<1x1x32x1xf32> to vector<32x1xf32>
    %79 = vector.broadcast %78 : vector<32x1xf32> to vector<32x256xf32>
    %80 = arith.addf %76, %79 : vector<32x256xf32>
    %c3_61 = arith.constant 3 : index
    %c0_62 = arith.constant 0 : index
    %c0_63 = arith.constant 0 : index
    %81 = vector.load %arg4[%c3_61, %c0_62, %c0_63] : memref<5x32x32xbf16, #tpu.memory_space<vmem>>, vector<1x32x32xbf16>
    %82 = vector.shape_cast %81 : vector<1x32x32xbf16> to vector<32x32xbf16>
    %cst_64 = arith.constant 0.000000e+00 : f32
    %83 = vector.broadcast %cst_64 : f32 to vector<32x256xf32>
    %84 = arith.maximumf %80, %83 : vector<32x256xf32>
    %85 = arith.truncf %84 : vector<32x256xf32> to vector<32x256xbf16>
    %cst_65 = arith.constant dense<0.000000e+00> : vector<32x256xf32>
    %86 = tpu.matmul %82, %85, %cst_65 {dimension_numbers = #tpu.dot_dimension_numbers<[1], [0], [0], [1], [0, 0, 1, 1], [], []>} : vector<32x32xbf16>, vector<32x256xbf16>, vector<32x256xf32> -> vector<32x256xf32>
    %c3_66 = arith.constant 3 : index
    %c0_67 = arith.constant 0 : index
    %c0_68 = arith.constant 0 : index
    %87 = vector.load %arg5[%c3_66, %c0_67, %c0_68] : memref<5x32x1xf32, #tpu.memory_space<vmem>>, vector<1x32x1xf32>
    %88 = vector.shape_cast %87 : vector<1x32x1xf32> to vector<32x1xf32>
    %89 = vector.broadcast %88 : vector<32x1xf32> to vector<32x256xf32>
    %90 = arith.addf %86, %89 : vector<32x256xf32>
    %c3_69 = arith.constant 3 : index
    %c0_70 = arith.constant 0 : index
    %c0_71 = arith.constant 0 : index
    %91 = vector.load %arg6[%c3_69, %c0_70, %c0_71] : memref<5x32x32xbf16, #tpu.memory_space<vmem>>, vector<1x32x32xbf16>
    %92 = vector.shape_cast %91 : vector<1x32x32xbf16> to vector<32x32xbf16>
    %cst_72 = arith.constant 0.000000e+00 : f32
    %93 = vector.broadcast %cst_72 : f32 to vector<32x256xf32>
    %94 = arith.maximumf %90, %93 : vector<32x256xf32>
    %95 = arith.truncf %94 : vector<32x256xf32> to vector<32x256xbf16>
    %cst_73 = arith.constant dense<0.000000e+00> : vector<32x256xf32>
    %96 = tpu.matmul %92, %95, %cst_73 {dimension_numbers = #tpu.dot_dimension_numbers<[1], [0], [0], [1], [0, 0, 1, 1], [], []>} : vector<32x32xbf16>, vector<32x256xbf16>, vector<32x256xf32> -> vector<32x256xf32>
    %c3_74 = arith.constant 3 : index
    %c0_75 = arith.constant 0 : index
    %c0_76 = arith.constant 0 : index
    %97 = vector.load %arg7[%c3_74, %c0_75, %c0_76] : memref<5x32x1xf32, #tpu.memory_space<vmem>>, vector<1x32x1xf32>
    %98 = vector.shape_cast %97 : vector<1x32x1xf32> to vector<32x1xf32>
    %99 = vector.broadcast %98 : vector<32x1xf32> to vector<32x256xf32>
    %100 = arith.addf %96, %99 : vector<32x256xf32>
    %101 = arith.addf %80, %100 : vector<32x256xf32>
    %c0_77 = arith.constant 0 : index
    %c4 = arith.constant 4 : index
    %c0_78 = arith.constant 0 : index
    %c0_79 = arith.constant 0 : index
    %102 = vector.load %arg3[%c0_77, %c4, %c0_78, %c0_79] : memref<1x5x32x1xf32, #tpu.memory_space<vmem>>, vector<1x1x32x1xf32>
    %103 = vector.shape_cast %102 : vector<1x1x32x1xf32> to vector<32x1xf32>
    %104 = vector.broadcast %103 : vector<32x1xf32> to vector<32x256xf32>
    %105 = arith.addf %101, %104 : vector<32x256xf32>
    %c4_80 = arith.constant 4 : index
    %c0_81 = arith.constant 0 : index
    %c0_82 = arith.constant 0 : index
    %106 = vector.load %arg4[%c4_80, %c0_81, %c0_82] : memref<5x32x32xbf16, #tpu.memory_space<vmem>>, vector<1x32x32xbf16>
    %107 = vector.shape_cast %106 : vector<1x32x32xbf16> to vector<32x32xbf16>
    %cst_83 = arith.constant 0.000000e+00 : f32
    %108 = vector.broadcast %cst_83 : f32 to vector<32x256xf32>
    %109 = arith.maximumf %105, %108 : vector<32x256xf32>
    %110 = arith.truncf %109 : vector<32x256xf32> to vector<32x256xbf16>
    %cst_84 = arith.constant dense<0.000000e+00> : vector<32x256xf32>
    %111 = tpu.matmul %107, %110, %cst_84 {dimension_numbers = #tpu.dot_dimension_numbers<[1], [0], [0], [1], [0, 0, 1, 1], [], []>} : vector<32x32xbf16>, vector<32x256xbf16>, vector<32x256xf32> -> vector<32x256xf32>
    %c4_85 = arith.constant 4 : index
    %c0_86 = arith.constant 0 : index
    %c0_87 = arith.constant 0 : index
    %112 = vector.load %arg5[%c4_85, %c0_86, %c0_87] : memref<5x32x1xf32, #tpu.memory_space<vmem>>, vector<1x32x1xf32>
    %113 = vector.shape_cast %112 : vector<1x32x1xf32> to vector<32x1xf32>
    %114 = vector.broadcast %113 : vector<32x1xf32> to vector<32x256xf32>
    %115 = arith.addf %111, %114 : vector<32x256xf32>
    %c4_88 = arith.constant 4 : index
    %c0_89 = arith.constant 0 : index
    %c0_90 = arith.constant 0 : index
    %116 = vector.load %arg6[%c4_88, %c0_89, %c0_90] : memref<5x32x32xbf16, #tpu.memory_space<vmem>>, vector<1x32x32xbf16>
    %117 = vector.shape_cast %116 : vector<1x32x32xbf16> to vector<32x32xbf16>
    %cst_91 = arith.constant 0.000000e+00 : f32
    %118 = vector.broadcast %cst_91 : f32 to vector<32x256xf32>
    %119 = arith.maximumf %115, %118 : vector<32x256xf32>
    %120 = arith.truncf %119 : vector<32x256xf32> to vector<32x256xbf16>
    %cst_92 = arith.constant dense<0.000000e+00> : vector<32x256xf32>
    %121 = tpu.matmul %117, %120, %cst_92 {dimension_numbers = #tpu.dot_dimension_numbers<[1], [0], [0], [1], [0, 0, 1, 1], [], []>} : vector<32x32xbf16>, vector<32x256xbf16>, vector<32x256xf32> -> vector<32x256xf32>
    %c4_93 = arith.constant 4 : index
    %c0_94 = arith.constant 0 : index
    %c0_95 = arith.constant 0 : index
    %122 = vector.load %arg7[%c4_93, %c0_94, %c0_95] : memref<5x32x1xf32, #tpu.memory_space<vmem>>, vector<1x32x1xf32>
    %123 = vector.shape_cast %122 : vector<1x32x1xf32> to vector<32x1xf32>
    %124 = vector.broadcast %123 : vector<32x1xf32> to vector<32x256xf32>
    %125 = arith.addf %121, %124 : vector<32x256xf32>
    %126 = arith.addf %105, %125 : vector<32x256xf32>
    %c0_96 = arith.constant 0 : index
    %c0_97 = arith.constant 0 : index
    %127 = vector.load %arg8[%c0_96, %c0_97] : memref<1x32xbf16, #tpu.memory_space<vmem>>, vector<1x32xbf16>
    %cst_98 = arith.constant 0.000000e+00 : f32
    %128 = vector.broadcast %cst_98 : f32 to vector<32x256xf32>
    %129 = arith.maximumf %126, %128 : vector<32x256xf32>
    %130 = arith.truncf %129 : vector<32x256xf32> to vector<32x256xbf16>
    %cst_99 = arith.constant dense<0.000000e+00> : vector<1x256xf32>
    %131 = tpu.matmul %127, %130, %cst_99 {dimension_numbers = #tpu.dot_dimension_numbers<[1], [0], [0], [1], [0, 0, 1, 1], [], []>} : vector<1x32xbf16>, vector<32x256xbf16>, vector<1x256xf32> -> vector<1x256xf32>
    %c0_100 = arith.constant 0 : index
    %c0_101 = arith.constant 0 : index
    %132 = vector.load %arg9[%c0_100, %c0_101] : memref<1x1xf32, #tpu.memory_space<vmem>>, vector<1x1xf32>
    %133 = vector.broadcast %132 : vector<1x1xf32> to vector<1x256xf32>
    %134 = arith.addf %131, %133 : vector<1x256xf32>
    %c0_102 = arith.constant 0 : index
    %c0_103 = arith.constant 0 : index
    %c0_104 = arith.constant 0 : index
    %135 = vector.load %arg10[%c0_102, %c0_103, %c0_104] : memref<1x1x256xf32, #tpu.memory_space<vmem>>, vector<1x1x256xf32>
    %136 = vector.shape_cast %135 : vector<1x1x256xf32> to vector<1x256xf32>
    %137 = vector.shape_cast %134 : vector<1x256xf32> to vector<1x1x256xf32>
    tpu.vector_store %arg10[%c0_102, %c0_103, %c0_104], %137 {strides = array<i32>} : memref<1x1x256xf32, #tpu.memory_space<vmem>>, vector<1x1x256xf32>,
    return
  }
  func.func @transform_0(%arg0: i32, %arg1: i32) -> (i32, i32) {
    %c0_i32 = arith.constant 0 : i32
    %c0_i32_0 = arith.constant 0 : i32
    return %c0_i32, %arg0 : i32, i32
  }
  func.func @transform_1(%arg0: i32, %arg1: i32) -> (i32, i32, i32, i32) {
    %c0_i32 = arith.constant 0 : i32
    %c0_i32_0 = arith.constant 0 : i32
    %c0_i32_1 = arith.constant 0 : i32
    %c0_i32_2 = arith.constant 0 : i32
    return %arg1, %c0_i32, %c0_i32_0, %c0_i32_1 : i32, i32, i32, i32
  }
  func.func @transform_2(%arg0: i32, %arg1: i32) -> (i32, i32, i32) {
    %c0_i32 = arith.constant 0 : i32
    %c0_i32_0 = arith.constant 0 : i32
    %c0_i32_1 = arith.constant 0 : i32
    %c0_i32_2 = arith.constant 0 : i32
    return %c0_i32, %c0_i32_0, %c0_i32_1 : i32, i32, i32
  }
  func.func @transform_3(%arg0: i32, %arg1: i32) -> (i32, i32, i32) {
    %c0_i32 = arith.constant 0 : i32
    %c0_i32_0 = arith.constant 0 : i32
    %c0_i32_1 = arith.constant 0 : i32
    %c0_i32_2 = arith.constant 0 : i32
    return %c0_i32, %c0_i32_0, %c0_i32_1 : i32, i32, i32
  }
  func.func @transform_4(%arg0: i32, %arg1: i32) -> (i32, i32, i32) {
    %c0_i32 = arith.constant 0 : i32
    %c0_i32_0 = arith.constant 0 : i32
    %c0_i32_1 = arith.constant 0 : i32
    %c0_i32_2 = arith.constant 0 : i32
    return %c0_i32, %c0_i32_0, %c0_i32_1 : i32, i32, i32
  }
  func.func @transform_5(%arg0: i32, %arg1: i32) -> (i32, i32, i32) {
    %c0_i32 = arith.constant 0 : i32
    %c0_i32_0 = arith.constant 0 : i32
    %c0_i32_1 = arith.constant 0 : i32
    %c0_i32_2 = arith.constant 0 : i32
    return %c0_i32, %c0_i32_0, %c0_i32_1 : i32, i32, i32
  }
  func.func @transform_6(%arg0: i32, %arg1: i32) -> (i32, i32) {
    %c0_i32 = arith.constant 0 : i32
    %c0_i32_0 = arith.constant 0 : i32
    %c0_i32_1 = arith.constant 0 : i32
    return %c0_i32, %c0_i32_0 : i32, i32
  }
  func.func @transform_7(%arg0: i32, %arg1: i32) -> (i32, i32) {
    %c0_i32 = arith.constant 0 : i32
    %c0_i32_0 = arith.constant 0 : i32
    %c0_i32_1 = arith.constant 0 : i32
    return %c0_i32, %c0_i32_0 : i32, i32
  }
  func.func @transform_8(%arg0: i32, %arg1: i32) -> (i32, i32, i32) {
    %c0_i32 = arith.constant 0 : i32
    %c0_i32_0 = arith.constant 0 : i32
    return %arg1, %c0_i32, %arg0 : i32, i32, i32
  }
}

</mosaic_0001>

<llo_original>
// kernel: tpu_custom_call.1
$region0: #{tpu_custom_call.1}
  #allocation0 [shape = 'u32[]', space=smem, size = 0x4, offset = 0x4, fixed_abs, tag = 'smem constant byte address 0x4 - core index']
  #allocation1 [shape = 'u32[144,128]{1,0:T(1,128)}', space=vmem, size = 0x12000, scoped, tag = 'internal scratch']
  #allocation2 [shape = 'f32[1,1]{1,0:T(1,128)S(1)}', space=vmem, size = 0x200, scoped, tag = 'scoped memory for tpu_custom_call.1']
  %s0 = inlined_call_operand.vmem [shape: bf16[32,256], index: 0, kind: input, shape index: {}]
  %s1 = inlined_call_operand.vmem [shape: f32[2,5,32,1], index: 1, kind: input, shape index: {}]
  %s2 = inlined_call_operand.vmem [shape: bf16[5,32,32], index: 2, kind: input, shape index: {}]
  %s3 = inlined_call_operand.vmem [shape: f32[5,32,1], index: 3, kind: input, shape index: {}]
  %s4 = inlined_call_operand.vmem [shape: bf16[5,32,32], index: 4, kind: input, shape index: {}]
  %s5 = inlined_call_operand.vmem [shape: f32[5,32,1], index: 5, kind: input, shape index: {}]
  %s6 = inlined_call_operand.vmem [shape: bf16[1,32], index: 6, kind: input, shape index: {}]
  %s7 = inlined_call_operand.<no memory space> [shape: f32[1,1], index: 7, kind: input, shape index: {}]
  %s8 = inlined_call_operand.hbm [shape: f32[2,1,256], index: 8, kind: output, shape index: {}]
  %s9 = sld [smem:[#allocation0]]
  $region65: #{tpu_custom_call.1} parent=0
    _
  %s11 = ssub.s32 1, %s9
  %s12 = scalar_select 0, %s11, %s9
  %v13 = vstv %s7
  %14 = vst [vmem:[#allocation2] sm:$0x1] %v13
  $region1: #{tpu_custom_call.1} parent=0
    #allocation3 [shape = 'u8[2048]{0}', space=vmem, size = 0x800, scoped, tag = 'output window, operand 0']
    #allocation4 [shape = 's32[2]{0}', space=sflag, size = 0x8, scoped, tag = 'scoped memory for tpu_custom_call.1']
    %15 = vsyncpa [#allocation4], 0
    %s16 = scalar_lea.sflag [#allocation4], 1
    %17 = vsyncpa %s16, 0
    loop: start=0, step=1, limit=4
    $region2: #{tpu_custom_call.1} parent=1 // loop_pre_header
      _
    $region3: #{tpu_custom_call.1} parent=1 // loop_header
      %s19 = sphi 0, %s23
      %p20 = scmp.ge.s32.totalorder %s19, 4
      %s26 = sphi 0, %s38
      %s27 = sphi 0, %s34
      %s28 = sphi 0, %s26
      %s29 = sphi 0, %s27
      %s30 = sphi 0, %s28
      %s31 = sphi 0, %s29
      %s41 = sphi 0, %s43
      %s44 = sphi 0, %s41
      %s45 = sphi 0, %s44
      %s61 = sphi 0, %s45
      %s67 = sphi 0, %s69
      %s70 = sphi 0, %s67
      %s71 = sphi 0, %s70
      %s87 = sphi 0, %s71
      %s91 = sphi 0, %s91
      %s93 = sphi 0, %s91
      %s94 = sphi 0, %s93
      %s108 = sphi 0, %s94
      %s112 = sphi 0, %s112
      %s114 = sphi 0, %s112
      %s115 = sphi 0, %s114
      %s129 = sphi 0, %s115
      %s133 = sphi 0, %s133
      %s135 = sphi 0, %s133
      %s136 = sphi 0, %s135
      %s150 = sphi 0, %s136
      %s154 = sphi 0, %s154
      %s156 = sphi 0, %s154
      %s157 = sphi 0, %s156
      %s171 = sphi 0, %s157
      %s175 = sphi 0, %s175
      %s177 = sphi 0, %s175
      %s178 = sphi 0, %s177
      %s192 = sphi 0, %s178
      %s196 = sphi 0, %s196
      %s198 = sphi 0, %s196
      %s199 = sphi 0, %s198
      %s213 = sphi 0, %s199
      %s221 = sphi 0, %s223
      %s224 = sphi 0, %s221
      %s225 = sphi 0, %s224
      %s241 = sphi 0, %s225
    $region4: #{tpu_custom_call.1} parent=1 // loop_header_branch
      %22 = sbr.rel (%p20) target = $region8
    $region5: #{tpu_custom_call.1} parent=1 // loop_body
      %s24 = ssub.s32 %s19, 1
      %s25 = ssub.s32 %s19, 2
      %s32 = sadd.s32 1, %s27
      %p33 = scmp.ge.s32.totalorder %s32, 2
      %s34 = scalar_select %p33, 0, %s32
      %s35 = sadd.s32 1, %s26
      %s36 = scalar_select %p33, %s35, %s26
      %p37 = scmp.ge.s32.totalorder %s36, 1
      %s38 = scalar_select %p37, 0, %s36
      %s39 = ssub.s32 %s26, %s38
      %p40 = scmp.eq.s32.totalorder %s39, 0
      %s42 = sadd.s32 %s41, 1
      %s43 = scalar_select %p40, %s41, %s42
      %p46 = pneg %p40
      %p47 = scmp.eq.s32.totalorder %s19, 1
      %p48 = por %p46, %p47
      %p49 = scmp.ne.s32.totalorder %s41, %s44
      %p50 = scmp.eq.s32.totalorder %s19, 0
      %p51 = por %p49, %p50
      %p52 = scmp.ne.s32.totalorder %s41, %s44
      %p53 = scmp.eq.s32.totalorder %s24, 1
      %p54 = por %p52, %p53
      %p55 = scmp.ne.s32.totalorder %s44, %s45
      %p56 = scmp.eq.s32.totalorder %s24, 0
      %p57 = por %p55, %p56
      %p58 = scmp.ne.s32.totalorder %s44, %s45
      %p59 = scmp.eq.s32.totalorder %s25, 1
      %p60 = por %p58, %p59
      %p62 = scmp.ne.s32.totalorder %s45, %s61
      %p63 = scmp.eq.s32.totalorder %s25, 0
      %p64 = por %p62, %p63
      %s65 = ssub.s32 %s27, %s34
      %p66 = scmp.eq.s32.totalorder %s65, 0
      %s68 = sadd.s32 %s67, 1
      %s69 = scalar_select %p66, %s67, %s68
      %p72 = pneg %p66
      %p73 = scmp.eq.s32.totalorder %s19, 1
      %p74 = por %p72, %p73
      %p75 = scmp.ne.s32.totalorder %s67, %s70
      %p76 = scmp.eq.s32.totalorder %s19, 0
      %p77 = por %p75, %p76
      %p78 = scmp.ne.s32.totalorder %s67, %s70
      %p79 = scmp.eq.s32.totalorder %s24, 1
      %p80 = por %p78, %p79
      %p81 = scmp.ne.s32.totalorder %s70, %s71
      %p82 = scmp.eq.s32.totalorder %s24, 0
      %p83 = por %p81, %p82
      %p84 = scmp.ne.s32.totalorder %s70, %s71
      %p85 = scmp.eq.s32.totalorder %s25, 1
      %p86 = por %p84, %p85
      %p88 = scmp.ne.s32.totalorder %s71, %s87
      %p89 = scmp.eq.s32.totalorder %s25, 0
      %p90 = por %p88, %p89
      %s92 = sadd.s32 %s91, 1
      %p95 = scmp.eq.s32.totalorder %s19, 1
      %p96 = scmp.ne.s32.totalorder %s91, %s93
      %p97 = scmp.eq.s32.totalorder %s19, 0
      %p98 = por %p96, %p97
      %p99 = scmp.ne.s32.totalorder %s91, %s93
      %p100 = scmp.eq.s32.totalorder %s24, 1
      %p101 = por %p99, %p100
      %p102 = scmp.ne.s32.totalorder %s93, %s94
      %p103 = scmp.eq.s32.totalorder %s24, 0
      %p104 = por %p102, %p103
      %p105 = scmp.ne.s32.totalorder %s93, %s94
      %p106 = scmp.eq.s32.totalorder %s25, 1
      %p107 = por %p105, %p106
      %p109 = scmp.ne.s32.totalorder %s94, %s108
      %p110 = scmp.eq.s32.totalorder %s25, 0
      %p111 = por %p109, %p110
      %s113 = sadd.s32 %s112, 1
      %p116 = scmp.eq.s32.totalorder %s19, 1
      %p117 = scmp.ne.s32.totalorder %s112, %s114
      %p118 = scmp.eq.s32.totalorder %s19, 0
      %p119 = por %p117, %p118
      %p120 = scmp.ne.s32.totalorder %s112, %s114
      %p121 = scmp.eq.s32.totalorder %s24, 1
      %p122 = por %p120, %p121
      %p123 = scmp.ne.s32.totalorder %s114, %s115
      %p124 = scmp.eq.s32.totalorder %s24, 0
      %p125 = por %p123, %p124
      %p126 = scmp.ne.s32.totalorder %s114, %s115
      %p127 = scmp.eq.s32.totalorder %s25, 1
      %p128 = por %p126, %p127
      %p130 = scmp.ne.s32.totalorder %s115, %s129
      %p131 = scmp.eq.s32.totalorder %s25, 0
      %p132 = por %p130, %p131
      %s134 = sadd.s32 %s133, 1
      %p137 = scmp.eq.s32.totalorder %s19, 1
      %p138 = scmp.ne.s32.totalorder %s133, %s135
      %p139 = scmp.eq.s32.totalorder %s19, 0
      %p140 = por %p138, %p139
      %p141 = scmp.ne.s32.totalorder %s133, %s135
      %p142 = scmp.eq.s32.totalorder %s24, 1
      %p143 = por %p141, %p142
      %p144 = scmp.ne.s32.totalorder %s135, %s136
      %p145 = scmp.eq.s32.totalorder %s24, 0
      %p146 = por %p144, %p145
      %p147 = scmp.ne.s32.totalorder %s135, %s136
      %p148 = scmp.eq.s32.totalorder %s25, 1
      %p149 = por %p147, %p148
      %p151 = scmp.ne.s32.totalorder %s136, %s150
      %p152 = scmp.eq.s32.totalorder %s25, 0
      %p153 = por %p151, %p152
      %s155 = sadd.s32 %s154, 1
      %p158 = scmp.eq.s32.totalorder %s19, 1
      %p159 = scmp.ne.s32.totalorder %s154, %s156
      %p160 = scmp.eq.s32.totalorder %s19, 0
      %p161 = por %p159, %p160
      %p162 = scmp.ne.s32.totalorder %s154, %s156
      %p163 = scmp.eq.s32.totalorder %s24, 1
      %p164 = por %p162, %p163
      %p165 = scmp.ne.s32.totalorder %s156, %s157
      %p166 = scmp.eq.s32.totalorder %s24, 0
      %p167 = por %p165, %p166
      %p168 = scmp.ne.s32.totalorder %s156, %s157
      %p169 = scmp.eq.s32.totalorder %s25, 1
      %p170 = por %p168, %p169
      %p172 = scmp.ne.s32.totalorder %s157, %s171
      %p173 = scmp.eq.s32.totalorder %s25, 0
      %p174 = por %p172, %p173
      %s176 = sadd.s32 %s175, 1
      %p179 = scmp.eq.s32.totalorder %s19, 1
      %p180 = scmp.ne.s32.totalorder %s175, %s177
      %p181 = scmp.eq.s32.totalorder %s19, 0
      %p182 = por %p180, %p181
      %p183 = scmp.ne.s32.totalorder %s175, %s177
      %p184 = scmp.eq.s32.totalorder %s24, 1
      %p185 = por %p183, %p184
      %p186 = scmp.ne.s32.totalorder %s177, %s178
      %p187 = scmp.eq.s32.totalorder %s24, 0
      %p188 = por %p186, %p187
      %p189 = scmp.ne.s32.totalorder %s177, %s178
      %p190 = scmp.eq.s32.totalorder %s25, 1
      %p191 = por %p189, %p190
      %p193 = scmp.ne.s32.totalorder %s178, %s192
      %p194 = scmp.eq.s32.totalorder %s25, 0
      %p195 = por %p193, %p194
      %s197 = sadd.s32 %s196, 1
      %p200 = scmp.eq.s32.totalorder %s19, 1
      %p201 = scmp.ne.s32.totalorder %s196, %s198
      %p202 = scmp.eq.s32.totalorder %s19, 0
      %p203 = por %p201, %p202
      %p204 = scmp.ne.s32.totalorder %s196, %s198
      %p205 = scmp.eq.s32.totalorder %s24, 1
      %p206 = por %p204, %p205
      %p207 = scmp.ne.s32.totalorder %s198, %s199
      %p208 = scmp.eq.s32.totalorder %s24, 0
      %p209 = por %p207, %p208
      %p210 = scmp.ne.s32.totalorder %s198, %s199
      %p211 = scmp.eq.s32.totalorder %s25, 1
      %p212 = por %p210, %p211
      %p214 = scmp.ne.s32.totalorder %s199, %s213
      %p215 = scmp.eq.s32.totalorder %s25, 0
      %p216 = por %p214, %p215
      %s217 = ssub.s32 %s27, %s34
      %s218 = ssub.s32 %s26, %s38
      %s219 = sor.u32 %s217, %s218
      %p220 = scmp.eq.s32.totalorder %s219, 0
      %s222 = sadd.s32 %s221, 1
      %s223 = scalar_select %p220, %s221, %s222
      %p226 = pneg %p220
      %p227 = scmp.eq.s32.totalorder %s19, 1
      %p228 = por %p226, %p227
      %p229 = scmp.ne.s32.totalorder %s221, %s224
      %p230 = scmp.eq.s32.totalorder %s19, 0
      %p231 = por %p229, %p230
      %p232 = scmp.ne.s32.totalorder %s221, %s224
      %p233 = scmp.eq.s32.totalorder %s24, 1
      %p234 = por %p232, %p233
      %p235 = scmp.ne.s32.totalorder %s224, %s225
      %p236 = scmp.eq.s32.totalorder %s24, 0
      %p237 = por %p235, %p236
      %p238 = scmp.ne.s32.totalorder %s224, %s225
      %p239 = scmp.eq.s32.totalorder %s25, 1
      %p240 = por %p238, %p239
      %p242 = scmp.ne.s32.totalorder %s225, %s241
      %p243 = scmp.eq.s32.totalorder %s25, 0
      %p244 = por %p242, %p243
      %p245 = scmp.le.s32.totalorder 1, %s19
      %p246 = scmp.lt.s32.totalorder %s19, 3
      %p247 = pnand %p245, %p246
      %p248 = pneg %p247
      // Predicated region
      $region9: #{tpu_custom_call.1} parent=5 // pred_check
        _
      $region10: #{tpu_custom_call.1} parent=5 // pred_check_branch
        %250 = sbr.rel (%p247) target = $region12
      $region11: #{tpu_custom_call.1} parent=5 // pred_region
        %s251 = ssub.s32 %s19, 1
        // Predicated region
        $region13: #{tpu_custom_call.1} parent=11 // pred_check
          %p252 = pneg %p57
        $region14: #{tpu_custom_call.1} parent=11 // pred_check_branch
          %254 = sbr.rel (%p252) target = $region16
        $region15: #{tpu_custom_call.1} parent=11 // pred_region
          %s255 = smul.u32 2, %s28
          %p256 = scmp.lt.s32.totalorder %s255, 1
          %s257 = scalar_select %p256, %s255, 1
          %s258 = smul.addr %s257, 4
          %s259 = scalar_lea.vmem %s0, %s258
          %s260 = smul.u32 2, %s28
        $region16: #{tpu_custom_call.1} parent=11 // pred_fallthru
          _
        // Predicated region
        $region17: #{tpu_custom_call.1} parent=11 // pred_check
          %p261 = pneg %p104
        $region18: #{tpu_custom_call.1} parent=11 // pred_check_branch
          %263 = sbr.rel (%p261) target = $region20
        $region19: #{tpu_custom_call.1} parent=11 // pred_region
          _
        $region20: #{tpu_custom_call.1} parent=11 // pred_fallthru
          _
        // Predicated region
        $region21: #{tpu_custom_call.1} parent=11 // pred_check
          %p264 = pneg %p125
        $region22: #{tpu_custom_call.1} parent=11 // pred_check_branch
          %266 = sbr.rel (%p264) target = $region24
        $region23: #{tpu_custom_call.1} parent=11 // pred_region
          _
        $region24: #{tpu_custom_call.1} parent=11 // pred_fallthru
          _
        // Predicated region
        $region25: #{tpu_custom_call.1} parent=11 // pred_check
          %p267 = pneg %p146
        $region26: #{tpu_custom_call.1} parent=11 // pred_check_branch
          %269 = sbr.rel (%p267) target = $region28
        $region27: #{tpu_custom_call.1} parent=11 // pred_region
          _
        $region28: #{tpu_custom_call.1} parent=11 // pred_fallthru
          _
        // Predicated region
        $region29: #{tpu_custom_call.1} parent=11 // pred_check
          %p270 = pneg %p167
        $region30: #{tpu_custom_call.1} parent=11 // pred_check_branch
          %272 = sbr.rel (%p270) target = $region32
        $region31: #{tpu_custom_call.1} parent=11 // pred_region
          _
        $region32: #{tpu_custom_call.1} parent=11 // pred_fallthru
          _
        // Predicated region
        $region33: #{tpu_custom_call.1} parent=11 // pred_check
          %p273 = pneg %p188
        $region34: #{tpu_custom_call.1} parent=11 // pred_check_branch
          %275 = sbr.rel (%p273) target = $region36
        $region35: #{tpu_custom_call.1} parent=11 // pred_region
          _
        $region36: #{tpu_custom_call.1} parent=11 // pred_fallthru
          _
        // Predicated region
        $region37: #{tpu_custom_call.1} parent=11 // pred_check
          %p276 = pneg %p209
        $region38: #{tpu_custom_call.1} parent=11 // pred_check_branch
          %278 = sbr.rel (%p276) target = $region40
        $region39: #{tpu_custom_call.1} parent=11 // pred_region
          _
        $region40: #{tpu_custom_call.1} parent=11 // pred_fallthru
          _
      $region12: #{tpu_custom_call.1} parent=5 // pred_fallthru
        _
      %p279 = scmp.lt.s32.totalorder %s19, 2
      // Predicated region
      $region41: #{tpu_custom_call.1} parent=5 // pred_check
        %p280 = pneg %p279
      $region42: #{tpu_custom_call.1} parent=5 // pred_check_branch
        %282 = sbr.rel (%p280) target = $region44
      $region43: #{tpu_custom_call.1} parent=5 // pred_region
        // Predicated region
        $region45: #{tpu_custom_call.1} parent=43 // pred_check
          %p283 = pneg %p77
        $region46: #{tpu_custom_call.1} parent=43 // pred_check_branch
          %285 = sbr.rel (%p283) target = $region48
        $region47: #{tpu_custom_call.1} parent=43 // pred_region
          %p286 = scmp.lt.s32.totalorder %s27, 1
          %s287 = scalar_select %p286, %s27, 1
          %s288 = smul.addr %s287, 20
          %s289 = smul.addr %s288, 8
          %s290 = scalar_lea.vmem %s1, %s289
        $region48: #{tpu_custom_call.1} parent=43 // pred_fallthru
          _
      $region44: #{tpu_custom_call.1} parent=5 // pred_fallthru
        _
      %p291 = scmp.le.s32.totalorder 1, %s19
      %p292 = scmp.lt.s32.totalorder %s19, 3
      %p293 = pnand %p291, %p292
      %p294 = pneg %p293
      // Predicated region
      $region49: #{tpu_custom_call.1} parent=5 // pred_check
        _
      $region50: #{tpu_custom_call.1} parent=5 // pred_check_branch
        %296 = sbr.rel (%p293) target = $region52
      $region51: #{tpu_custom_call.1} parent=5 // pred_region
        %s297 = ssub.s32 %s19, 1
        %s298 = smul.u32 2, %s28
        %p299 = scmp.lt.s32.totalorder %s298, 1
        %s300 = scalar_select %p299, %s298, 1
        %s301 = smul.addr %s300, 4
        %s302 = scalar_lea.vmem %s0, %s301
        %p303 = pneg %p57
        %p304 = pneg %p54
        %p305 = scmp.lt.s32.totalorder %s29, 1
        %s306 = scalar_select %p305, %s29, 1
        %s307 = smul.addr %s306, 20
        %s308 = smul.addr %s307, 8
        %s309 = scalar_lea.vmem %s1, %s308
        %p310 = pneg %p83
        %p311 = pneg %p80
        %p312 = pneg %p104
        %p313 = pneg %p101
        %p314 = pneg %p125
        %p315 = pneg %p122
        %p316 = pneg %p146
        %p317 = pneg %p143
        %p318 = pneg %p167
        %p319 = pneg %p164
        %p320 = pneg %p188
        %p321 = pneg %p185
        %p322 = pneg %p209
        %p323 = pneg %p206
        %p324 = pneg %p237
        %p325 = pneg %p234
        %s326 = sand.u32 %s224, 1
        %s327 = scalar_lea.sflag [#allocation4], %s326
        %s328 = sand.u32 %s224, 1
        %s329 = smul.addr %s328, 2
        %s330 = scalar_lea.vmem [#allocation3], %s329
        %s331 = smul.u32 2, %s28
        %p332 = scmp.lt.s32.totalorder %s331, 1
        %s333 = scalar_select %p332, %s331, 1
        %s334 = smul.addr %s333, 4
        %s335 = scalar_lea.vmem %s0, %s334
        %s336 = smul.u32 2, %s28
        %p337 = scmp.lt.s32.totalorder %s29, 1
        %s338 = scalar_select %p337, %s29, 1
        %s339 = smul.addr %s338, 20
        %s340 = smul.addr %s339, 8
        %s341 = scalar_lea.vmem %s1, %s340
        %s342 = smul.u32 2, %s28
        %v344 = vld [vmem:[%s335] sm:$0xff]
        %v345 = vld [vmem:[%s335 + $0x8] sm:$0xff]
        %v346 = vld [vmem:[%s335 + $0x10] sm:$0xff]
        %v347 = vld [vmem:[%s335 + $0x18] sm:$0xff]
        %v348 = vunpack.c.l.bf16 %v344
        %v349 = vunpack.c.h.bf16 %v344
        %v350 = vunpack.c.l.bf16 %v345
        %v351 = vunpack.c.h.bf16 %v345
        %v352 = vunpack.c.l.bf16 %v346
        %v353 = vunpack.c.h.bf16 %v346
        %v354 = vunpack.c.l.bf16 %v347
        %v355 = vunpack.c.h.bf16 %v347
        %v356 = vld [vmem:[%s341] sm:$0xff]
        %v357 = vld [vmem:[%s341 + $0x8] sm:$0xff]
        %v358 = vld [vmem:[%s341 + $0x10] sm:$0xff]
        %v359 = vld [vmem:[%s341 + $0x18] sm:$0xff]
        %361 = vset.pattern.permute.xlu0 0
        %362 = vperm.xlu0 %361, %v356
        %v363 = vpop.permute.xlu0 %362
        %366 = vset.pattern.permute.xlu0 0
        %367 = vperm.xlu0 %366, %v357
        %v368 = vpop.permute.xlu0 %367
        %371 = vset.pattern.permute.xlu0 0
        %372 = vperm.xlu0 %371, %v358
        %v373 = vpop.permute.xlu0 %372
        %376 = vset.pattern.permute.xlu0 0
        %377 = vperm.xlu0 %376, %v359
        %v378 = vpop.permute.xlu0 %377
        %v380 = vadd.f32 %v348, %v363
        %v381 = vadd.f32 %v349, %v363
        %v382 = vadd.f32 %v350, %v368
        %v383 = vadd.f32 %v351, %v368
        %v384 = vadd.f32 %v352, %v373
        %v385 = vadd.f32 %v353, %v373
        %v386 = vadd.f32 %v354, %v378
        %v387 = vadd.f32 %v355, %v378
        %v388 = vld [vmem:[%s2] sm:$0xf]
        %v389 = vld [vmem:[%s2 + $0x4] sm:$0xf]
        %v390 = vld [vmem:[%s2 + $0x8] sm:$0xf]
        %v391 = vld [vmem:[%s2 + $0xc] sm:$0xf]
        %v392 = vmax.f32 %v380, 0.0
        %v393 = vmax.f32 %v381, 0.0
        %v394 = vmax.f32 %v382, 0.0
        %v395 = vmax.f32 %v383, 0.0
        %v396 = vmax.f32 %v384, 0.0
        %v397 = vmax.f32 %v385, 0.0
        %v398 = vmax.f32 %v386, 0.0
        %v399 = vmax.f32 %v387, 0.0
        %v400 = vpack.c.bf16 %v394, %v392
        %v401 = vpack.c.bf16 %v395, %v393
        %v402 = vpack.c.bf16 %v398, %v396
        %v403 = vpack.c.bf16 %v399, %v397
        %v404 = vld [vmem:[%s3] sm:$0xff]
        %v405 = vld [vmem:[%s3 + $0x8] sm:$0xff]
        %v406 = vld [vmem:[%s3 + $0x10] sm:$0xff]
        %v407 = vld [vmem:[%s3 + $0x18] sm:$0xff]
        %409 = vset.pattern.permute.xlu0 0
        %410 = vperm.xlu0 %409, %v404
        %v411 = vpop.permute.xlu0 %410
        %414 = vset.pattern.permute.xlu0 0
        %415 = vperm.xlu0 %414, %v405
        %v416 = vpop.permute.xlu0 %415
        %419 = vset.pattern.permute.xlu0 0
        %420 = vperm.xlu0 %419, %v406
        %v421 = vpop.permute.xlu0 %420
        %424 = vset.pattern.permute.xlu0 0
        %425 = vperm.xlu0 %424, %v407
        %v426 = vpop.permute.xlu0 %425
        %v432 = vunpack.c.l.b16 %v388
        %v433 = vunpack.c.l.b16 %v389
        %v434 = vunpack.c.l.b16 %v390
        %v435 = vunpack.c.l.b16 %v391
        %v436 = vpack.c.b16 %v433, %v432
        %v437 = vpack.c.b16 %v435, %v434
        %vm438 = vcmask 261120
        %v440 = vsel %vm438, %v436, 0
        %v443 = vsel %vm438, %v437, 0
        %445 = vmatprep.subr.bf16.mxu0 %v401
        %446 = vmatpush1.bf16.msra.mxu0 %v400
        %447 = vmatprep.subr.bf16.mxu0 %v403
        %448 = vmatpush1.bf16.msra.mxu0 %v402
        %449 = vmatprep.subr.bf16.mxu0 0
        %450 = vmatpush1.bf16.msra.mxu0 0
        %451 = vmatprep.subr.bf16.mxu0 0
        %452 = vmatpush1.bf16.msra.mxu0 0
        %453 = vmatprep.subr.bf16.mxu0 0
        %454 = vmatpush1.bf16.msra.mxu0 0
        %455 = vmatprep.subr.bf16.mxu0 0
        %456 = vmatpush1.bf16.msra.mxu0 0
        %457 = vmatprep.subr.bf16.mxu0 0
        %458 = vmatpush1.bf16.msra.mxu0 0
        %459 = vmatprep.subr.bf16.mxu0 0
        %460 = vmatpush1.bf16.msra.mxu0 0
        %461 = vmatprep.subr.bf16.mxu0 0
        %462 = vmatpush1.bf16.msra.mxu0 0
        %463 = vmatprep.subr.bf16.mxu0 0
        %464 = vmatpush1.bf16.msra.mxu0 0
        %465 = vmatprep.subr.bf16.mxu0 0
        %466 = vmatpush1.bf16.msra.mxu0 0
        %467 = vmatprep.subr.bf16.mxu0 0
        %468 = vmatpush1.bf16.msra.mxu0 0
        %469 = vmatprep.subr.bf16.mxu0 0
        %470 = vmatpush1.bf16.msra.mxu0 0
        %471 = vmatprep.subr.bf16.mxu0 0
        %472 = vmatpush1.bf16.msra.mxu0 0
        %473 = vmatprep.subr.bf16.mxu0 0
        %474 = vmatpush1.bf16.msra.mxu0 0
        %475 = vmatprep.subr.bf16.mxu0 0
        %476 = vmatpush1.bf16.msra.mxu0 0
        %477 = vmatprep.mubr.bf16.mxu0 0
        %478 = vmatmul.mubr.bf16.gmra.mrb[0].mxu0 %v440
        %v479 = vpop.f32.mrb[0].mxu0
        %v480 = vadd.f32 %v411, %v479
        %v481 = vpop.f32.mrb[0].mxu0
        %v482 = vadd.f32 %v411, %v481
        %v483 = vpop.f32.mrb[0].mxu0
        %v484 = vadd.f32 %v416, %v483
        %v485 = vpop.f32.mrb[0].mxu0
        %v486 = vadd.f32 %v416, %v485
        %487 = vmatprep.mubr.bf16.mxu0 0
        %488 = vmatmul.mubr.bf16.gmra.mrb[0].mxu0 %v443
        %v489 = vpop.f32.mrb[0].mxu0
        %v490 = vadd.f32 %v421, %v489
        %v491 = vpop.f32.mrb[0].mxu0
        %v492 = vadd.f32 %v421, %v491
        %v493 = vpop.f32.mrb[0].mxu0
        %v494 = vadd.f32 %v426, %v493
        %v495 = vpop.f32.mrb[0].mxu0
        %v496 = vadd.f32 %v426, %v495
        %497 = vdwg.mxu0
        %v498 = vld [vmem:[%s4] sm:$0xf]
        %v499 = vld [vmem:[%s4 + $0x4] sm:$0xf]
        %v500 = vld [vmem:[%s4 + $0x8] sm:$0xf]
        %v501 = vld [vmem:[%s4 + $0xc] sm:$0xf]
        %v502 = vmax.f32 %v480, 0.0
        %v503 = vmax.f32 %v482, 0.0
        %v504 = vmax.f32 %v484, 0.0
        %v505 = vmax.f32 %v486, 0.0
        %v506 = vmax.f32 %v490, 0.0
        %v507 = vmax.f32 %v492, 0.0
        %v508 = vmax.f32 %v494, 0.0
        %v509 = vmax.f32 %v496, 0.0
        %v510 = vpack.c.bf16 %v504, %v502
        %v511 = vpack.c.bf16 %v505, %v503
        %v512 = vpack.c.bf16 %v508, %v506
        %v513 = vpack.c.bf16 %v509, %v507
        %v514 = vld [vmem:[%s5] sm:$0xff]
        %v515 = vld [vmem:[%s5 + $0x8] sm:$0xff]
        %v516 = vld [vmem:[%s5 + $0x10] sm:$0xff]
        %v517 = vld [vmem:[%s5 + $0x18] sm:$0xff]
        %519 = vset.pattern.permute.xlu0 0
        %520 = vperm.xlu0 %519, %v514
        %v521 = vpop.permute.xlu0 %520
        %524 = vset.pattern.permute.xlu0 0
        %525 = vperm.xlu0 %524, %v515
        %v526 = vpop.permute.xlu0 %525
        %529 = vset.pattern.permute.xlu0 0
        %530 = vperm.xlu0 %529, %v516
        %v531 = vpop.permute.xlu0 %530
        %534 = vset.pattern.permute.xlu0 0
        %535 = vperm.xlu0 %534, %v517
        %v536 = vpop.permute.xlu0 %535
        %v542 = vunpack.c.l.b16 %v498
        %v543 = vunpack.c.l.b16 %v499
        %v544 = vunpack.c.l.b16 %v500
        %v545 = vunpack.c.l.b16 %v501
        %v546 = vpack.c.b16 %v543, %v542
        %v547 = vpack.c.b16 %v545, %v544
        %v549 = vsel %vm438, %v546, 0
        %v552 = vsel %vm438, %v547, 0
        %554 = vmatprep.subr.bf16.mxu0 %v511
        %555 = vmatpush1.bf16.msra.mxu0 %v510
        %556 = vmatprep.subr.bf16.mxu0 %v513
        %557 = vmatpush1.bf16.msra.mxu0 %v512
        %558 = vmatprep.subr.bf16.mxu0 0
        %559 = vmatpush1.bf16.msra.mxu0 0
        %560 = vmatprep.subr.bf16.mxu0 0
        %561 = vmatpush1.bf16.msra.mxu0 0
        %562 = vmatprep.subr.bf16.mxu0 0
        %563 = vmatpush1.bf16.msra.mxu0 0
        %564 = vmatprep.subr.bf16.mxu0 0
        %565 = vmatpush1.bf16.msra.mxu0 0
        %566 = vmatprep.subr.bf16.mxu0 0
        %567 = vmatpush1.bf16.msra.mxu0 0
        %568 = vmatprep.subr.bf16.mxu0 0
        %569 = vmatpush1.bf16.msra.mxu0 0
        %570 = vmatprep.subr.bf16.mxu0 0
        %571 = vmatpush1.bf16.msra.mxu0 0
        %572 = vmatprep.subr.bf16.mxu0 0
        %573 = vmatpush1.bf16.msra.mxu0 0
        %574 = vmatprep.subr.bf16.mxu0 0
        %575 = vmatpush1.bf16.msra.mxu0 0
        %576 = vmatprep.subr.bf16.mxu0 0
        %577 = vmatpush1.bf16.msra.mxu0 0
        %578 = vmatprep.subr.bf16.mxu0 0
        %579 = vmatpush1.bf16.msra.mxu0 0
        %580 = vmatprep.subr.bf16.mxu0 0
        %581 = vmatpush1.bf16.msra.mxu0 0
        %582 = vmatprep.subr.bf16.mxu0 0
        %583 = vmatpush1.bf16.msra.mxu0 0
        %584 = vmatprep.subr.bf16.mxu0 0
        %585 = vmatpush1.bf16.msra.mxu0 0
        %586 = vmatprep.mubr.bf16.mxu0 0
        %587 = vmatmul.mubr.bf16.gmra.mrb[0].mxu0 %v549
        %v588 = vpop.f32.mrb[0].mxu0
        %v589 = vadd.f32 %v521, %v588
        %v590 = vpop.f32.mrb[0].mxu0
        %v591 = vadd.f32 %v521, %v590
        %v592 = vpop.f32.mrb[0].mxu0
        %v593 = vadd.f32 %v526, %v592
        %v594 = vpop.f32.mrb[0].mxu0
        %v595 = vadd.f32 %v526, %v594
        %596 = vmatprep.mubr.bf16.mxu0 0
        %597 = vmatmul.mubr.bf16.gmra.mrb[0].mxu0 %v552
        %v598 = vpop.f32.mrb[0].mxu0
        %v599 = vadd.f32 %v531, %v598
        %v600 = vpop.f32.mrb[0].mxu0
        %v601 = vadd.f32 %v531, %v600
        %v602 = vpop.f32.mrb[0].mxu0
        %v603 = vadd.f32 %v536, %v602
        %v604 = vpop.f32.mrb[0].mxu0
        %v605 = vadd.f32 %v536, %v604
        %606 = vdwg.mxu0
        %v607 = vadd.f32 %v380, %v589
        %v608 = vadd.f32 %v381, %v591
        %v609 = vadd.f32 %v382, %v593
        %v610 = vadd.f32 %v383, %v595
        %v611 = vadd.f32 %v384, %v599
        %v612 = vadd.f32 %v385, %v601
        %v613 = vadd.f32 %v386, %v603
        %v614 = vadd.f32 %v387, %v605
        %s615 = scalar_lea.vmem %s341, 32
        %v616 = vld [vmem:[%s615] sm:$0xff]
        %v617 = vld [vmem:[%s615 + $0x8] sm:$0xff]
        %v618 = vld [vmem:[%s615 + $0x10] sm:$0xff]
        %v619 = vld [vmem:[%s615 + $0x18] sm:$0xff]
        %621 = vset.pattern.permute.xlu0 0
        %622 = vperm.xlu0 %621, %v616
        %v623 = vpop.permute.xlu0 %622
        %626 = vset.pattern.permute.xlu0 0
        %627 = vperm.xlu0 %626, %v617
        %v628 = vpop.permute.xlu0 %627
        %631 = vset.pattern.permute.xlu0 0
        %632 = vperm.xlu0 %631, %v618
        %v633 = vpop.permute.xlu0 %632
        %636 = vset.pattern.permute.xlu0 0
        %637 = vperm.xlu0 %636, %v619
        %v638 = vpop.permute.xlu0 %637
        %v640 = vadd.f32 %v607, %v623
        %v641 = vadd.f32 %v608, %v623
        %v642 = vadd.f32 %v609, %v628
        %v643 = vadd.f32 %v610, %v628
        %v644 = vadd.f32 %v611, %v633
        %v645 = vadd.f32 %v612, %v633
        %v646 = vadd.f32 %v613, %v638
        %v647 = vadd.f32 %v614, %v638
        %s648 = scalar_lea.vmem %s2, 16
        %v649 = vld [vmem:[%s648] sm:$0xf]
        %v650 = vld [vmem:[%s648 + $0x4] sm:$0xf]
        %v651 = vld [vmem:[%s648 + $0x8] sm:$0xf]
        %v652 = vld [vmem:[%s648 + $0xc] sm:$0xf]
        %v653 = vmax.f32 %v640, 0.0
        %v654 = vmax.f32 %v641, 0.0
        %v655 = vmax.f32 %v642, 0.0
        %v656 = vmax.f32 %v643, 0.0
        %v657 = vmax.f32 %v644, 0.0
        %v658 = vmax.f32 %v645, 0.0
        %v659 = vmax.f32 %v646, 0.0
        %v660 = vmax.f32 %v647, 0.0
        %v661 = vpack.c.bf16 %v655, %v653
        %v662 = vpack.c.bf16 %v656, %v654
        %v663 = vpack.c.bf16 %v659, %v657
        %v664 = vpack.c.bf16 %v660, %v658
        %s665 = scalar_lea.vmem %s3, 32
        %v666 = vld [vmem:[%s665] sm:$0xff]
        %v667 = vld [vmem:[%s665 + $0x8] sm:$0xff]
        %v668 = vld [vmem:[%s665 + $0x10] sm:$0xff]
        %v669 = vld [vmem:[%s665 + $0x18] sm:$0xff]
        %671 = vset.pattern.permute.xlu0 0
        %672 = vperm.xlu0 %671, %v666
        %v673 = vpop.permute.xlu0 %672
        %676 = vset.pattern.permute.xlu0 0
        %677 = vperm.xlu0 %676, %v667
        %v678 = vpop.permute.xlu0 %677
        %681 = vset.pattern.permute.xlu0 0
        %682 = vperm.xlu0 %681, %v668
        %v683 = vpop.permute.xlu0 %682
        %686 = vset.pattern.permute.xlu0 0
        %687 = vperm.xlu0 %686, %v669
        %v688 = vpop.permute.xlu0 %687
        %v694 = vunpack.c.l.b16 %v649
        %v695 = vunpack.c.l.b16 %v650
        %v696 = vunpack.c.l.b16 %v651
        %v697 = vunpack.c.l.b16 %v652
        %v698 = vpack.c.b16 %v695, %v694
        %v699 = vpack.c.b16 %v697, %v696
        %v701 = vsel %vm438, %v698, 0
        %v704 = vsel %vm438, %v699, 0
        %706 = vmatprep.subr.bf16.mxu0 %v662
        %707 = vmatpush1.bf16.msra.mxu0 %v661
        %708 = vmatprep.subr.bf16.mxu0 %v664
        %709 = vmatpush1.bf16.msra.mxu0 %v663
        %710 = vmatprep.subr.bf16.mxu0 0
        %711 = vmatpush1.bf16.msra.mxu0 0
        %712 = vmatprep.subr.bf16.mxu0 0
        %713 = vmatpush1.bf16.msra.mxu0 0
        %714 = vmatprep.subr.bf16.mxu0 0
        %715 = vmatpush1.bf16.msra.mxu0 0
        %716 = vmatprep.subr.bf16.mxu0 0
        %717 = vmatpush1.bf16.msra.mxu0 0
        %718 = vmatprep.subr.bf16.mxu0 0
        %719 = vmatpush1.bf16.msra.mxu0 0
        %720 = vmatprep.subr.bf16.mxu0 0
        %721 = vmatpush1.bf16.msra.mxu0 0
        %722 = vmatprep.subr.bf16.mxu0 0
        %723 = vmatpush1.bf16.msra.mxu0 0
        %724 = vmatprep.subr.bf16.mxu0 0
        %725 = vmatpush1.bf16.msra.mxu0 0
        %726 = vmatprep.subr.bf16.mxu0 0
        %727 = vmatpush1.bf16.msra.mxu0 0
        %728 = vmatprep.subr.bf16.mxu0 0
        %729 = vmatpush1.bf16.msra.mxu0 0
        %730 = vmatprep.subr.bf16.mxu0 0
        %731 = vmatpush1.bf16.msra.mxu0 0
        %732 = vmatprep.subr.bf16.mxu0 0
        %733 = vmatpush1.bf16.msra.mxu0 0
        %734 = vmatprep.subr.bf16.mxu0 0
        %735 = vmatpush1.bf16.msra.mxu0 0
        %736 = vmatprep.subr.bf16.mxu0 0
        %737 = vmatpush1.bf16.msra.mxu0 0
        %738 = vmatprep.mubr.bf16.mxu0 0
        %739 = vmatmul.mubr.bf16.gmra.mrb[0].mxu0 %v701
        %v740 = vpop.f32.mrb[0].mxu0
        %v741 = vadd.f32 %v673, %v740
        %v742 = vpop.f32.mrb[0].mxu0
        %v743 = vadd.f32 %v673, %v742
        %v744 = vpop.f32.mrb[0].mxu0
        %v745 = vadd.f32 %v678, %v744
        %v746 = vpop.f32.mrb[0].mxu0
        %v747 = vadd.f32 %v678, %v746
        %748 = vmatprep.mubr.bf16.mxu0 0
        %749 = vmatmul.mubr.bf16.gmra.mrb[0].mxu0 %v704
        %v750 = vpop.f32.mrb[0].mxu0
        %v751 = vadd.f32 %v683, %v750
        %v752 = vpop.f32.mrb[0].mxu0
        %v753 = vadd.f32 %v683, %v752
        %v754 = vpop.f32.mrb[0].mxu0
        %v755 = vadd.f32 %v688, %v754
        %v756 = vpop.f32.mrb[0].mxu0
        %v757 = vadd.f32 %v688, %v756
        %758 = vdwg.mxu0
        %s759 = scalar_lea.vmem %s4, 16
        %v760 = vld [vmem:[%s759] sm:$0xf]
        %v761 = vld [vmem:[%s759 + $0x4] sm:$0xf]
        %v762 = vld [vmem:[%s759 + $0x8] sm:$0xf]
        %v763 = vld [vmem:[%s759 + $0xc] sm:$0xf]
        %v764 = vmax.f32 %v741, 0.0
        %v765 = vmax.f32 %v743, 0.0
        %v766 = vmax.f32 %v745, 0.0
        %v767 = vmax.f32 %v747, 0.0
        %v768 = vmax.f32 %v751, 0.0
        %v769 = vmax.f32 %v753, 0.0
        %v770 = vmax.f32 %v755, 0.0
        %v771 = vmax.f32 %v757, 0.0
        %v772 = vpack.c.bf16 %v766, %v764
        %v773 = vpack.c.bf16 %v767, %v765
        %v774 = vpack.c.bf16 %v770, %v768
        %v775 = vpack.c.bf16 %v771, %v769
        %s776 = scalar_lea.vmem %s5, 32
        %v777 = vld [vmem:[%s776] sm:$0xff]
        %v778 = vld [vmem:[%s776 + $0x8] sm:$0xff]
        %v779 = vld [vmem:[%s776 + $0x10] sm:$0xff]
        %v780 = vld [vmem:[%s776 + $0x18] sm:$0xff]
        %782 = vset.pattern.permute.xlu0 0
        %783 = vperm.xlu0 %782, %v777
        %v784 = vpop.permute.xlu0 %783
        %787 = vset.pattern.permute.xlu0 0
        %788 = vperm.xlu0 %787, %v778
        %v789 = vpop.permute.xlu0 %788
        %792 = vset.pattern.permute.xlu0 0
        %793 = vperm.xlu0 %792, %v779
        %v794 = vpop.permute.xlu0 %793
        %797 = vset.pattern.permute.xlu0 0
        %798 = vperm.xlu0 %797, %v780
        %v799 = vpop.permute.xlu0 %798
        %v805 = vunpack.c.l.b16 %v760
        %v806 = vunpack.c.l.b16 %v761
        %v807 = vunpack.c.l.b16 %v762
        %v808 = vunpack.c.l.b16 %v763
        %v809 = vpack.c.b16 %v806, %v805
        %v810 = vpack.c.b16 %v808, %v807
        %v812 = vsel %vm438, %v809, 0
        %v815 = vsel %vm438, %v810, 0
        %817 = vmatprep.subr.bf16.mxu0 %v773
        %818 = vmatpush1.bf16.msra.mxu0 %v772
        %819 = vmatprep.subr.bf16.mxu0 %v775
        %820 = vmatpush1.bf16.msra.mxu0 %v774
        %821 = vmatprep.subr.bf16.mxu0 0
        %822 = vmatpush1.bf16.msra.mxu0 0
        %823 = vmatprep.subr.bf16.mxu0 0
        %824 = vmatpush1.bf16.msra.mxu0 0
        %825 = vmatprep.subr.bf16.mxu0 0
        %826 = vmatpush1.bf16.msra.mxu0 0
        %827 = vmatprep.subr.bf16.mxu0 0
        %828 = vmatpush1.bf16.msra.mxu0 0
        %829 = vmatprep.subr.bf16.mxu0 0
        %830 = vmatpush1.bf16.msra.mxu0 0
        %831 = vmatprep.subr.bf16.mxu0 0
        %832 = vmatpush1.bf16.msra.mxu0 0
        %833 = vmatprep.subr.bf16.mxu0 0
        %834 = vmatpush1.bf16.msra.mxu0 0
        %835 = vmatprep.subr.bf16.mxu0 0
        %836 = vmatpush1.bf16.msra.mxu0 0
        %837 = vmatprep.subr.bf16.mxu0 0
        %838 = vmatpush1.bf16.msra.mxu0 0
        %839 = vmatprep.subr.bf16.mxu0 0
        %840 = vmatpush1.bf16.msra.mxu0 0
        %841 = vmatprep.subr.bf16.mxu0 0
        %842 = vmatpush1.bf16.msra.mxu0 0
        %843 = vmatprep.subr.bf16.mxu0 0
        %844 = vmatpush1.bf16.msra.mxu0 0
        %845 = vmatprep.subr.bf16.mxu0 0
        %846 = vmatpush1.bf16.msra.mxu0 0
        %847 = vmatprep.subr.bf16.mxu0 0
        %848 = vmatpush1.bf16.msra.mxu0 0
        %849 = vmatprep.mubr.bf16.mxu0 0
        %850 = vmatmul.mubr.bf16.gmra.mrb[0].mxu0 %v812
        %v851 = vpop.f32.mrb[0].mxu0
        %v852 = vadd.f32 %v784, %v851
        %v853 = vpop.f32.mrb[0].mxu0
        %v854 = vadd.f32 %v784, %v853
        %v855 = vpop.f32.mrb[0].mxu0
        %v856 = vadd.f32 %v789, %v855
        %v857 = vpop.f32.mrb[0].mxu0
        %v858 = vadd.f32 %v789, %v857
        %859 = vmatprep.mubr.bf16.mxu0 0
        %860 = vmatmul.mubr.bf16.gmra.mrb[0].mxu0 %v815
        %v861 = vpop.f32.mrb[0].mxu0
        %v862 = vadd.f32 %v794, %v861
        %v863 = vpop.f32.mrb[0].mxu0
        %v864 = vadd.f32 %v794, %v863
        %v865 = vpop.f32.mrb[0].mxu0
        %v866 = vadd.f32 %v799, %v865
        %v867 = vpop.f32.mrb[0].mxu0
        %v868 = vadd.f32 %v799, %v867
        %869 = vdwg.mxu0
        %v870 = vadd.f32 %v640, %v852
        %v871 = vadd.f32 %v641, %v854
        %v872 = vadd.f32 %v642, %v856
        %v873 = vadd.f32 %v643, %v858
        %v874 = vadd.f32 %v644, %v862
        %v875 = vadd.f32 %v645, %v864
        %v876 = vadd.f32 %v646, %v866
        %v877 = vadd.f32 %v647, %v868
        %s878 = scalar_lea.vmem %s341, 64
        %v879 = vld [vmem:[%s878] sm:$0xff]
        %v880 = vld [vmem:[%s878 + $0x8] sm:$0xff]
        %v881 = vld [vmem:[%s878 + $0x10] sm:$0xff]
        %v882 = vld [vmem:[%s878 + $0x18] sm:$0xff]
        %884 = vset.pattern.permute.xlu0 0
        %885 = vperm.xlu0 %884, %v879
        %v886 = vpop.permute.xlu0 %885
        %889 = vset.pattern.permute.xlu0 0
        %890 = vperm.xlu0 %889, %v880
        %v891 = vpop.permute.xlu0 %890
        %894 = vset.pattern.permute.xlu0 0
        %895 = vperm.xlu0 %894, %v881
        %v896 = vpop.permute.xlu0 %895
        %899 = vset.pattern.permute.xlu0 0
        %900 = vperm.xlu0 %899, %v882
        %v901 = vpop.permute.xlu0 %900
        %v903 = vadd.f32 %v870, %v886
        %v904 = vadd.f32 %v871, %v886
        %v905 = vadd.f32 %v872, %v891
        %v906 = vadd.f32 %v873, %v891
        %v907 = vadd.f32 %v874, %v896
        %v908 = vadd.f32 %v875, %v896
        %v909 = vadd.f32 %v876, %v901
        %v910 = vadd.f32 %v877, %v901
        %s911 = scalar_lea.vmem %s2, 32
        %v912 = vld [vmem:[%s911] sm:$0xf]
        %v913 = vld [vmem:[%s911 + $0x4] sm:$0xf]
        %v914 = vld [vmem:[%s911 + $0x8] sm:$0xf]
        %v915 = vld [vmem:[%s911 + $0xc] sm:$0xf]
        %v916 = vmax.f32 %v903, 0.0
        %v917 = vmax.f32 %v904, 0.0
        %v918 = vmax.f32 %v905, 0.0
        %v919 = vmax.f32 %v906, 0.0
        %v920 = vmax.f32 %v907, 0.0
        %v921 = vmax.f32 %v908, 0.0
        %v922 = vmax.f32 %v909, 0.0
        %v923 = vmax.f32 %v910, 0.0
        %v924 = vpack.c.bf16 %v918, %v916
        %v925 = vpack.c.bf16 %v919, %v917
        %v926 = vpack.c.bf16 %v922, %v920
        %v927 = vpack.c.bf16 %v923, %v921
        %s928 = scalar_lea.vmem %s3, 64
        %v929 = vld [vmem:[%s928] sm:$0xff]
        %v930 = vld [vmem:[%s928 + $0x8] sm:$0xff]
        %v931 = vld [vmem:[%s928 + $0x10] sm:$0xff]
        %v932 = vld [vmem:[%s928 + $0x18] sm:$0xff]
        %934 = vset.pattern.permute.xlu0 0
        %935 = vperm.xlu0 %934, %v929
        %v936 = vpop.permute.xlu0 %935
        %939 = vset.pattern.permute.xlu0 0
        %940 = vperm.xlu0 %939, %v930
        %v941 = vpop.permute.xlu0 %940
        %944 = vset.pattern.permute.xlu0 0
        %945 = vperm.xlu0 %944, %v931
        %v946 = vpop.permute.xlu0 %945
        %949 = vset.pattern.permute.xlu0 0
        %950 = vperm.xlu0 %949, %v932
        %v951 = vpop.permute.xlu0 %950
        %v957 = vunpack.c.l.b16 %v912
        %v958 = vunpack.c.l.b16 %v913
        %v959 = vunpack.c.l.b16 %v914
        %v960 = vunpack.c.l.b16 %v915
        %v961 = vpack.c.b16 %v958, %v957
        %v962 = vpack.c.b16 %v960, %v959
        %v964 = vsel %vm438, %v961, 0
        %v967 = vsel %vm438, %v962, 0
        %969 = vmatprep.subr.bf16.mxu0 %v925
        %970 = vmatpush1.bf16.msra.mxu0 %v924
        %971 = vmatprep.subr.bf16.mxu0 %v927
        %972 = vmatpush1.bf16.msra.mxu0 %v926
        %973 = vmatprep.subr.bf16.mxu0 0
        %974 = vmatpush1.bf16.msra.mxu0 0
        %975 = vmatprep.subr.bf16.mxu0 0
        %976 = vmatpush1.bf16.msra.mxu0 0
        %977 = vmatprep.subr.bf16.mxu0 0
        %978 = vmatpush1.bf16.msra.mxu0 0
        %979 = vmatprep.subr.bf16.mxu0 0
        %980 = vmatpush1.bf16.msra.mxu0 0
        %981 = vmatprep.subr.bf16.mxu0 0
        %982 = vmatpush1.bf16.msra.mxu0 0
        %983 = vmatprep.subr.bf16.mxu0 0
        %984 = vmatpush1.bf16.msra.mxu0 0
        %985 = vmatprep.subr.bf16.mxu0 0
        %986 = vmatpush1.bf16.msra.mxu0 0
        %987 = vmatprep.subr.bf16.mxu0 0
        %988 = vmatpush1.bf16.msra.mxu0 0
        %989 = vmatprep.subr.bf16.mxu0 0
        %990 = vmatpush1.bf16.msra.mxu0 0
        %991 = vmatprep.subr.bf16.mxu0 0
        %992 = vmatpush1.bf16.msra.mxu0 0
        %993 = vmatprep.subr.bf16.mxu0 0
        %994 = vmatpush1.bf16.msra.mxu0 0
        %995 = vmatprep.subr.bf16.mxu0 0
        %996 = vmatpush1.bf16.msra.mxu0 0
        %997 = vmatprep.subr.bf16.mxu0 0
        %998 = vmatpush1.bf16.msra.mxu0 0
        %999 = vmatprep.subr.bf16.mxu0 0
        %1000 = vmatpush1.bf16.msra.mxu0 0
        %1001 = vmatprep.mubr.bf16.mxu0 0
        %1002 = vmatmul.mubr.bf16.gmra.mrb[0].mxu0 %v964
        %v1003 = vpop.f32.mrb[0].mxu0
        %v1004 = vadd.f32 %v936, %v1003
        %v1005 = vpop.f32.mrb[0].mxu0
        %v1006 = vadd.f32 %v936, %v1005
        %v1007 = vpop.f32.mrb[0].mxu0
        %v1008 = vadd.f32 %v941, %v1007
        %v1009 = vpop.f32.mrb[0].mxu0
        %v1010 = vadd.f32 %v941, %v1009
        %1011 = vmatprep.mubr.bf16.mxu0 0
        %1012 = vmatmul.mubr.bf16.gmra.mrb[0].mxu0 %v967
        %v1013 = vpop.f32.mrb[0].mxu0
        %v1014 = vadd.f32 %v946, %v1013
        %v1015 = vpop.f32.mrb[0].mxu0
        %v1016 = vadd.f32 %v946, %v1015
        %v1017 = vpop.f32.mrb[0].mxu0
        %v1018 = vadd.f32 %v951, %v1017
        %v1019 = vpop.f32.mrb[0].mxu0
        %v1020 = vadd.f32 %v951, %v1019
        %1021 = vdwg.mxu0
        %s1022 = scalar_lea.vmem %s4, 32
        %v1023 = vld [vmem:[%s1022] sm:$0xf]
        %v1024 = vld [vmem:[%s1022 + $0x4] sm:$0xf]
        %v1025 = vld [vmem:[%s1022 + $0x8] sm:$0xf]
        %v1026 = vld [vmem:[%s1022 + $0xc] sm:$0xf]
        %v1027 = vmax.f32 %v1004, 0.0
        %v1028 = vmax.f32 %v1006, 0.0
        %v1029 = vmax.f32 %v1008, 0.0
        %v1030 = vmax.f32 %v1010, 0.0
        %v1031 = vmax.f32 %v1014, 0.0
        %v1032 = vmax.f32 %v1016, 0.0
        %v1033 = vmax.f32 %v1018, 0.0
        %v1034 = vmax.f32 %v1020, 0.0
        %v1035 = vpack.c.bf16 %v1029, %v1027
        %v1036 = vpack.c.bf16 %v1030, %v1028
        %v1037 = vpack.c.bf16 %v1033, %v1031
        %v1038 = vpack.c.bf16 %v1034, %v1032
        %s1039 = scalar_lea.vmem %s5, 64
        %v1040 = vld [vmem:[%s1039] sm:$0xff]
        %v1041 = vld [vmem:[%s1039 + $0x8] sm:$0xff]
        %v1042 = vld [vmem:[%s1039 + $0x10] sm:$0xff]
        %v1043 = vld [vmem:[%s1039 + $0x18] sm:$0xff]
        %1045 = vset.pattern.permute.xlu0 0
        %1046 = vperm.xlu0 %1045, %v1040
        %v1047 = vpop.permute.xlu0 %1046
        %1050 = vset.pattern.permute.xlu0 0
        %1051 = vperm.xlu0 %1050, %v1041
        %v1052 = vpop.permute.xlu0 %1051
        %1055 = vset.pattern.permute.xlu0 0
        %1056 = vperm.xlu0 %1055, %v1042
        %v1057 = vpop.permute.xlu0 %1056
        %1060 = vset.pattern.permute.xlu0 0
        %1061 = vperm.xlu0 %1060, %v1043
        %v1062 = vpop.permute.xlu0 %1061
        %v1068 = vunpack.c.l.b16 %v1023
        %v1069 = vunpack.c.l.b16 %v1024
        %v1070 = vunpack.c.l.b16 %v1025
        %v1071 = vunpack.c.l.b16 %v1026
        %v1072 = vpack.c.b16 %v1069, %v1068
        %v1073 = vpack.c.b16 %v1071, %v1070
        %v1075 = vsel %vm438, %v1072, 0
        %v1078 = vsel %vm438, %v1073, 0
        %1080 = vmatprep.subr.bf16.mxu0 %v1036
        %1081 = vmatpush1.bf16.msra.mxu0 %v1035
        %1082 = vmatprep.subr.bf16.mxu0 %v1038
        %1083 = vmatpush1.bf16.msra.mxu0 %v1037
        %1084 = vmatprep.subr.bf16.mxu0 0
        %1085 = vmatpush1.bf16.msra.mxu0 0
        %1086 = vmatprep.subr.bf16.mxu0 0
        %1087 = vmatpush1.bf16.msra.mxu0 0
        %1088 = vmatprep.subr.bf16.mxu0 0
        %1089 = vmatpush1.bf16.msra.mxu0 0
        %1090 = vmatprep.subr.bf16.mxu0 0
        %1091 = vmatpush1.bf16.msra.mxu0 0
        %1092 = vmatprep.subr.bf16.mxu0 0
        %1093 = vmatpush1.bf16.msra.mxu0 0
        %1094 = vmatprep.subr.bf16.mxu0 0
        %1095 = vmatpush1.bf16.msra.mxu0 0
        %1096 = vmatprep.subr.bf16.mxu0 0
        %1097 = vmatpush1.bf16.msra.mxu0 0
        %1098 = vmatprep.subr.bf16.mxu0 0
        %1099 = vmatpush1.bf16.msra.mxu0 0
        %1100 = vmatprep.subr.bf16.mxu0 0
        %1101 = vmatpush1.bf16.msra.mxu0 0
        %1102 = vmatprep.subr.bf16.mxu0 0
        %1103 = vmatpush1.bf16.msra.mxu0 0
        %1104 = vmatprep.subr.bf16.mxu0 0
        %1105 = vmatpush1.bf16.msra.mxu0 0
        %1106 = vmatprep.subr.bf16.mxu0 0
        %1107 = vmatpush1.bf16.msra.mxu0 0
        %1108 = vmatprep.subr.bf16.mxu0 0
        %1109 = vmatpush1.bf16.msra.mxu0 0
        %1110 = vmatprep.subr.bf16.mxu0 0
        %1111 = vmatpush1.bf16.msra.mxu0 0
        %1112 = vmatprep.mubr.bf16.mxu0 0
        %1113 = vmatmul.mubr.bf16.gmra.mrb[0].mxu0 %v1075
        %v1114 = vpop.f32.mrb[0].mxu0
        %v1115 = vadd.f32 %v1047, %v1114
        %v1116 = vpop.f32.mrb[0].mxu0
        %v1117 = vadd.f32 %v1047, %v1116
        %v1118 = vpop.f32.mrb[0].mxu0
        %v1119 = vadd.f32 %v1052, %v1118
        %v1120 = vpop.f32.mrb[0].mxu0
        %v1121 = vadd.f32 %v1052, %v1120
        %1122 = vmatprep.mubr.bf16.mxu0 0
        %1123 = vmatmul.mubr.bf16.gmra.mrb[0].mxu0 %v1078
        %v1124 = vpop.f32.mrb[0].mxu0
        %v1125 = vadd.f32 %v1057, %v1124
        %v1126 = vpop.f32.mrb[0].mxu0
        %v1127 = vadd.f32 %v1057, %v1126
        %v1128 = vpop.f32.mrb[0].mxu0
        %v1129 = vadd.f32 %v1062, %v1128
        %v1130 = vpop.f32.mrb[0].mxu0
        %v1131 = vadd.f32 %v1062, %v1130
        %1132 = vdwg.mxu0
        %v1133 = vadd.f32 %v903, %v1115
        %v1134 = vadd.f32 %v904, %v1117
        %v1135 = vadd.f32 %v905, %v1119
        %v1136 = vadd.f32 %v906, %v1121
        %v1137 = vadd.f32 %v907, %v1125
        %v1138 = vadd.f32 %v908, %v1127
        %v1139 = vadd.f32 %v909, %v1129
        %v1140 = vadd.f32 %v910, %v1131
        %s1141 = scalar_lea.vmem %s341, 96
        %v1142 = vld [vmem:[%s1141] sm:$0xff]
        %v1143 = vld [vmem:[%s1141 + $0x8] sm:$0xff]
        %v1144 = vld [vmem:[%s1141 + $0x10] sm:$0xff]
        %v1145 = vld [vmem:[%s1141 + $0x18] sm:$0xff]
        %1147 = vset.pattern.permute.xlu0 0
        %1148 = vperm.xlu0 %1147, %v1142
        %v1149 = vpop.permute.xlu0 %1148
        %1152 = vset.pattern.permute.xlu0 0
        %1153 = vperm.xlu0 %1152, %v1143
        %v1154 = vpop.permute.xlu0 %1153
        %1157 = vset.pattern.permute.xlu0 0
        %1158 = vperm.xlu0 %1157, %v1144
        %v1159 = vpop.permute.xlu0 %1158
        %1162 = vset.pattern.permute.xlu0 0
        %1163 = vperm.xlu0 %1162, %v1145
        %v1164 = vpop.permute.xlu0 %1163
        %v1166 = vadd.f32 %v1133, %v1149
        %v1167 = vadd.f32 %v1134, %v1149
        %v1168 = vadd.f32 %v1135, %v1154
        %v1169 = vadd.f32 %v1136, %v1154
        %v1170 = vadd.f32 %v1137, %v1159
        %v1171 = vadd.f32 %v1138, %v1159
        %v1172 = vadd.f32 %v1139, %v1164
        %v1173 = vadd.f32 %v1140, %v1164
        %s1174 = scalar_lea.vmem %s2, 48
        %v1175 = vld [vmem:[%s1174] sm:$0xf]
        %v1176 = vld [vmem:[%s1174 + $0x4] sm:$0xf]
        %v1177 = vld [vmem:[%s1174 + $0x8] sm:$0xf]
        %v1178 = vld [vmem:[%s1174 + $0xc] sm:$0xf]
        %v1179 = vmax.f32 %v1166, 0.0
        %v1180 = vmax.f32 %v1167, 0.0
        %v1181 = vmax.f32 %v1168, 0.0
        %v1182 = vmax.f32 %v1169, 0.0
        %v1183 = vmax.f32 %v1170, 0.0
        %v1184 = vmax.f32 %v1171, 0.0
        %v1185 = vmax.f32 %v1172, 0.0
        %v1186 = vmax.f32 %v1173, 0.0
        %v1187 = vpack.c.bf16 %v1181, %v1179
        %v1188 = vpack.c.bf16 %v1182, %v1180
        %v1189 = vpack.c.bf16 %v1185, %v1183
        %v1190 = vpack.c.bf16 %v1186, %v1184
        %s1191 = scalar_lea.vmem %s3, 96
        %v1192 = vld [vmem:[%s1191] sm:$0xff]
        %v1193 = vld [vmem:[%s1191 + $0x8] sm:$0xff]
        %v1194 = vld [vmem:[%s1191 + $0x10] sm:$0xff]
        %v1195 = vld [vmem:[%s1191 + $0x18] sm:$0xff]
        %1197 = vset.pattern.permute.xlu0 0
        %1198 = vperm.xlu0 %1197, %v1192
        %v1199 = vpop.permute.xlu0 %1198
        %1202 = vset.pattern.permute.xlu0 0
        %1203 = vperm.xlu0 %1202, %v1193
        %v1204 = vpop.permute.xlu0 %1203
        %1207 = vset.pattern.permute.xlu0 0
        %1208 = vperm.xlu0 %1207, %v1194
        %v1209 = vpop.permute.xlu0 %1208
        %1212 = vset.pattern.permute.xlu0 0
        %1213 = vperm.xlu0 %1212, %v1195
        %v1214 = vpop.permute.xlu0 %1213
        %v1220 = vunpack.c.l.b16 %v1175
        %v1221 = vunpack.c.l.b16 %v1176
        %v1222 = vunpack.c.l.b16 %v1177
        %v1223 = vunpack.c.l.b16 %v1178
        %v1224 = vpack.c.b16 %v1221, %v1220
        %v1225 = vpack.c.b16 %v1223, %v1222
        %v1227 = vsel %vm438, %v1224, 0
        %v1230 = vsel %vm438, %v1225, 0
        %1232 = vmatprep.subr.bf16.mxu0 %v1188
        %1233 = vmatpush1.bf16.msra.mxu0 %v1187
        %1234 = vmatprep.subr.bf16.mxu0 %v1190
        %1235 = vmatpush1.bf16.msra.mxu0 %v1189
        %1236 = vmatprep.subr.bf16.mxu0 0
        %1237 = vmatpush1.bf16.msra.mxu0 0
        %1238 = vmatprep.subr.bf16.mxu0 0
        %1239 = vmatpush1.bf16.msra.mxu0 0
        %1240 = vmatprep.subr.bf16.mxu0 0
        %1241 = vmatpush1.bf16.msra.mxu0 0
        %1242 = vmatprep.subr.bf16.mxu0 0
        %1243 = vmatpush1.bf16.msra.mxu0 0
        %1244 = vmatprep.subr.bf16.mxu0 0
        %1245 = vmatpush1.bf16.msra.mxu0 0
        %1246 = vmatprep.subr.bf16.mxu0 0
        %1247 = vmatpush1.bf16.msra.mxu0 0
        %1248 = vmatprep.subr.bf16.mxu0 0
        %1249 = vmatpush1.bf16.msra.mxu0 0
        %1250 = vmatprep.subr.bf16.mxu0 0
        %1251 = vmatpush1.bf16.msra.mxu0 0
        %1252 = vmatprep.subr.bf16.mxu0 0
        %1253 = vmatpush1.bf16.msra.mxu0 0
        %1254 = vmatprep.subr.bf16.mxu0 0
        %1255 = vmatpush1.bf16.msra.mxu0 0
        %1256 = vmatprep.subr.bf16.mxu0 0
        %1257 = vmatpush1.bf16.msra.mxu0 0
        %1258 = vmatprep.subr.bf16.mxu0 0
        %1259 = vmatpush1.bf16.msra.mxu0 0
        %1260 = vmatprep.subr.bf16.mxu0 0
        %1261 = vmatpush1.bf16.msra.mxu0 0
        %1262 = vmatprep.subr.bf16.mxu0 0
        %1263 = vmatpush1.bf16.msra.mxu0 0
        %1264 = vmatprep.mubr.bf16.mxu0 0
        %1265 = vmatmul.mubr.bf16.gmra.mrb[0].mxu0 %v1227
        %v1266 = vpop.f32.mrb[0].mxu0
        %v1267 = vadd.f32 %v1199, %v1266
        %v1268 = vpop.f32.mrb[0].mxu0
        %v1269 = vadd.f32 %v1199, %v1268
        %v1270 = vpop.f32.mrb[0].mxu0
        %v1271 = vadd.f32 %v1204, %v1270
        %v1272 = vpop.f32.mrb[0].mxu0
        %v1273 = vadd.f32 %v1204, %v1272
        %1274 = vmatprep.mubr.bf16.mxu0 0
        %1275 = vmatmul.mubr.bf16.gmra.mrb[0].mxu0 %v1230
        %v1276 = vpop.f32.mrb[0].mxu0
        %v1277 = vadd.f32 %v1209, %v1276
        %v1278 = vpop.f32.mrb[0].mxu0
        %v1279 = vadd.f32 %v1209, %v1278
        %v1280 = vpop.f32.mrb[0].mxu0
        %v1281 = vadd.f32 %v1214, %v1280
        %v1282 = vpop.f32.mrb[0].mxu0
        %v1283 = vadd.f32 %v1214, %v1282
        %1284 = vdwg.mxu0
        %s1285 = scalar_lea.vmem %s4, 48
        %v1286 = vld [vmem:[%s1285] sm:$0xf]
        %v1287 = vld [vmem:[%s1285 + $0x4] sm:$0xf]
        %v1288 = vld [vmem:[%s1285 + $0x8] sm:$0xf]
        %v1289 = vld [vmem:[%s1285 + $0xc] sm:$0xf]
        %v1290 = vmax.f32 %v1267, 0.0
        %v1291 = vmax.f32 %v1269, 0.0
        %v1292 = vmax.f32 %v1271, 0.0
        %v1293 = vmax.f32 %v1273, 0.0
        %v1294 = vmax.f32 %v1277, 0.0
        %v1295 = vmax.f32 %v1279, 0.0
        %v1296 = vmax.f32 %v1281, 0.0
        %v1297 = vmax.f32 %v1283, 0.0
        %v1298 = vpack.c.bf16 %v1292, %v1290
        %v1299 = vpack.c.bf16 %v1293, %v1291
        %v1300 = vpack.c.bf16 %v1296, %v1294
        %v1301 = vpack.c.bf16 %v1297, %v1295
        %s1302 = scalar_lea.vmem %s5, 96
        %v1303 = vld [vmem:[%s1302] sm:$0xff]
        %v1304 = vld [vmem:[%s1302 + $0x8] sm:$0xff]
        %v1305 = vld [vmem:[%s1302 + $0x10] sm:$0xff]
        %v1306 = vld [vmem:[%s1302 + $0x18] sm:$0xff]
        %1308 = vset.pattern.permute.xlu0 0
        %1309 = vperm.xlu0 %1308, %v1303
        %v1310 = vpop.permute.xlu0 %1309
        %1313 = vset.pattern.permute.xlu0 0
        %1314 = vperm.xlu0 %1313, %v1304
        %v1315 = vpop.permute.xlu0 %1314
        %1318 = vset.pattern.permute.xlu0 0
        %1319 = vperm.xlu0 %1318, %v1305
        %v1320 = vpop.permute.xlu0 %1319
        %1323 = vset.pattern.permute.xlu0 0
        %1324 = vperm.xlu0 %1323, %v1306
        %v1325 = vpop.permute.xlu0 %1324
        %v1331 = vunpack.c.l.b16 %v1286
        %v1332 = vunpack.c.l.b16 %v1287
        %v1333 = vunpack.c.l.b16 %v1288
        %v1334 = vunpack.c.l.b16 %v1289
        %v1335 = vpack.c.b16 %v1332, %v1331
        %v1336 = vpack.c.b16 %v1334, %v1333
        %v1338 = vsel %vm438, %v1335, 0
        %v1341 = vsel %vm438, %v1336, 0
        %1343 = vmatprep.subr.bf16.mxu0 %v1299
        %1344 = vmatpush1.bf16.msra.mxu0 %v1298
        %1345 = vmatprep.subr.bf16.mxu0 %v1301
        %1346 = vmatpush1.bf16.msra.mxu0 %v1300
        %1347 = vmatprep.subr.bf16.mxu0 0
        %1348 = vmatpush1.bf16.msra.mxu0 0
        %1349 = vmatprep.subr.bf16.mxu0 0
        %1350 = vmatpush1.bf16.msra.mxu0 0
        %1351 = vmatprep.subr.bf16.mxu0 0
        %1352 = vmatpush1.bf16.msra.mxu0 0
        %1353 = vmatprep.subr.bf16.mxu0 0
        %1354 = vmatpush1.bf16.msra.mxu0 0
        %1355 = vmatprep.subr.bf16.mxu0 0
        %1356 = vmatpush1.bf16.msra.mxu0 0
        %1357 = vmatprep.subr.bf16.mxu0 0
        %1358 = vmatpush1.bf16.msra.mxu0 0
        %1359 = vmatprep.subr.bf16.mxu0 0
        %1360 = vmatpush1.bf16.msra.mxu0 0
        %1361 = vmatprep.subr.bf16.mxu0 0
        %1362 = vmatpush1.bf16.msra.mxu0 0
        %1363 = vmatprep.subr.bf16.mxu0 0
        %1364 = vmatpush1.bf16.msra.mxu0 0
        %1365 = vmatprep.subr.bf16.mxu0 0
        %1366 = vmatpush1.bf16.msra.mxu0 0
        %1367 = vmatprep.subr.bf16.mxu0 0
        %1368 = vmatpush1.bf16.msra.mxu0 0
        %1369 = vmatprep.subr.bf16.mxu0 0
        %1370 = vmatpush1.bf16.msra.mxu0 0
        %1371 = vmatprep.subr.bf16.mxu0 0
        %1372 = vmatpush1.bf16.msra.mxu0 0
        %1373 = vmatprep.subr.bf16.mxu0 0
        %1374 = vmatpush1.bf16.msra.mxu0 0
        %1375 = vmatprep.mubr.bf16.mxu0 0
        %1376 = vmatmul.mubr.bf16.gmra.mrb[0].mxu0 %v1338
        %v1377 = vpop.f32.mrb[0].mxu0
        %v1378 = vadd.f32 %v1310, %v1377
        %v1379 = vpop.f32.mrb[0].mxu0
        %v1380 = vadd.f32 %v1310, %v1379
        %v1381 = vpop.f32.mrb[0].mxu0
        %v1382 = vadd.f32 %v1315, %v1381
        %v1383 = vpop.f32.mrb[0].mxu0
        %v1384 = vadd.f32 %v1315, %v1383
        %1385 = vmatprep.mubr.bf16.mxu0 0
        %1386 = vmatmul.mubr.bf16.gmra.mrb[0].mxu0 %v1341
        %v1387 = vpop.f32.mrb[0].mxu0
        %v1388 = vadd.f32 %v1320, %v1387
        %v1389 = vpop.f32.mrb[0].mxu0
        %v1390 = vadd.f32 %v1320, %v1389
        %v1391 = vpop.f32.mrb[0].mxu0
        %v1392 = vadd.f32 %v1325, %v1391
        %v1393 = vpop.f32.mrb[0].mxu0
        %v1394 = vadd.f32 %v1325, %v1393
        %1395 = vdwg.mxu0
        %v1396 = vadd.f32 %v1166, %v1378
        %v1397 = vadd.f32 %v1167, %v1380
        %v1398 = vadd.f32 %v1168, %v1382
        %v1399 = vadd.f32 %v1169, %v1384
        %v1400 = vadd.f32 %v1170, %v1388
        %v1401 = vadd.f32 %v1171, %v1390
        %v1402 = vadd.f32 %v1172, %v1392
        %v1403 = vadd.f32 %v1173, %v1394
        %s1404 = scalar_lea.vmem %s341, 128
        %v1405 = vld [vmem:[%s1404] sm:$0xff]
        %v1406 = vld [vmem:[%s1404 + $0x8] sm:$0xff]
        %v1407 = vld [vmem:[%s1404 + $0x10] sm:$0xff]
        %v1408 = vld [vmem:[%s1404 + $0x18] sm:$0xff]
        %1410 = vset.pattern.permute.xlu0 0
        %1411 = vperm.xlu0 %1410, %v1405
        %v1412 = vpop.permute.xlu0 %1411
        %1415 = vset.pattern.permute.xlu0 0
        %1416 = vperm.xlu0 %1415, %v1406
        %v1417 = vpop.permute.xlu0 %1416
        %1420 = vset.pattern.permute.xlu0 0
        %1421 = vperm.xlu0 %1420, %v1407
        %v1422 = vpop.permute.xlu0 %1421
        %1425 = vset.pattern.permute.xlu0 0
        %1426 = vperm.xlu0 %1425, %v1408
        %v1427 = vpop.permute.xlu0 %1426
        %v1429 = vadd.f32 %v1396, %v1412
        %v1430 = vadd.f32 %v1397, %v1412
        %v1431 = vadd.f32 %v1398, %v1417
        %v1432 = vadd.f32 %v1399, %v1417
        %v1433 = vadd.f32 %v1400, %v1422
        %v1434 = vadd.f32 %v1401, %v1422
        %v1435 = vadd.f32 %v1402, %v1427
        %v1436 = vadd.f32 %v1403, %v1427
        %s1437 = scalar_lea.vmem %s2, 64
        %v1438 = vld [vmem:[%s1437] sm:$0xf]
        %v1439 = vld [vmem:[%s1437 + $0x4] sm:$0xf]
        %v1440 = vld [vmem:[%s1437 + $0x8] sm:$0xf]
        %v1441 = vld [vmem:[%s1437 + $0xc] sm:$0xf]
        %v1442 = vmax.f32 %v1429, 0.0
        %v1443 = vmax.f32 %v1430, 0.0
        %v1444 = vmax.f32 %v1431, 0.0
        %v1445 = vmax.f32 %v1432, 0.0
        %v1446 = vmax.f32 %v1433, 0.0
        %v1447 = vmax.f32 %v1434, 0.0
        %v1448 = vmax.f32 %v1435, 0.0
        %v1449 = vmax.f32 %v1436, 0.0
        %v1450 = vpack.c.bf16 %v1444, %v1442
        %v1451 = vpack.c.bf16 %v1445, %v1443
        %v1452 = vpack.c.bf16 %v1448, %v1446
        %v1453 = vpack.c.bf16 %v1449, %v1447
        %s1454 = scalar_lea.vmem %s3, 128
        %v1455 = vld [vmem:[%s1454] sm:$0xff]
        %v1456 = vld [vmem:[%s1454 + $0x8] sm:$0xff]
        %v1457 = vld [vmem:[%s1454 + $0x10] sm:$0xff]
        %v1458 = vld [vmem:[%s1454 + $0x18] sm:$0xff]
        %1460 = vset.pattern.permute.xlu0 0
        %1461 = vperm.xlu0 %1460, %v1455
        %v1462 = vpop.permute.xlu0 %1461
        %1465 = vset.pattern.permute.xlu0 0
        %1466 = vperm.xlu0 %1465, %v1456
        %v1467 = vpop.permute.xlu0 %1466
        %1470 = vset.pattern.permute.xlu0 0
        %1471 = vperm.xlu0 %1470, %v1457
        %v1472 = vpop.permute.xlu0 %1471
        %1475 = vset.pattern.permute.xlu0 0
        %1476 = vperm.xlu0 %1475, %v1458
        %v1477 = vpop.permute.xlu0 %1476
        %v1483 = vunpack.c.l.b16 %v1438
        %v1484 = vunpack.c.l.b16 %v1439
        %v1485 = vunpack.c.l.b16 %v1440
        %v1486 = vunpack.c.l.b16 %v1441
        %v1487 = vpack.c.b16 %v1484, %v1483
        %v1488 = vpack.c.b16 %v1486, %v1485
        %v1490 = vsel %vm438, %v1487, 0
        %v1493 = vsel %vm438, %v1488, 0
        %1495 = vmatprep.subr.bf16.mxu0 %v1451
        %1496 = vmatpush1.bf16.msra.mxu0 %v1450
        %1497 = vmatprep.subr.bf16.mxu0 %v1453
        %1498 = vmatpush1.bf16.msra.mxu0 %v1452
        %1499 = vmatprep.subr.bf16.mxu0 0
        %1500 = vmatpush1.bf16.msra.mxu0 0
        %1501 = vmatprep.subr.bf16.mxu0 0
        %1502 = vmatpush1.bf16.msra.mxu0 0
        %1503 = vmatprep.subr.bf16.mxu0 0
        %1504 = vmatpush1.bf16.msra.mxu0 0
        %1505 = vmatprep.subr.bf16.mxu0 0
        %1506 = vmatpush1.bf16.msra.mxu0 0
        %1507 = vmatprep.subr.bf16.mxu0 0
        %1508 = vmatpush1.bf16.msra.mxu0 0
        %1509 = vmatprep.subr.bf16.mxu0 0
        %1510 = vmatpush1.bf16.msra.mxu0 0
        %1511 = vmatprep.subr.bf16.mxu0 0
        %1512 = vmatpush1.bf16.msra.mxu0 0
        %1513 = vmatprep.subr.bf16.mxu0 0
        %1514 = vmatpush1.bf16.msra.mxu0 0
        %1515 = vmatprep.subr.bf16.mxu0 0
        %1516 = vmatpush1.bf16.msra.mxu0 0
        %1517 = vmatprep.subr.bf16.mxu0 0
        %1518 = vmatpush1.bf16.msra.mxu0 0
        %1519 = vmatprep.subr.bf16.mxu0 0
        %1520 = vmatpush1.bf16.msra.mxu0 0
        %1521 = vmatprep.subr.bf16.mxu0 0
        %1522 = vmatpush1.bf16.msra.mxu0 0
        %1523 = vmatprep.subr.bf16.mxu0 0
        %1524 = vmatpush1.bf16.msra.mxu0 0
        %1525 = vmatprep.subr.bf16.mxu0 0
        %1526 = vmatpush1.bf16.msra.mxu0 0
        %1527 = vmatprep.mubr.bf16.mxu0 0
        %1528 = vmatmul.mubr.bf16.gmra.mrb[0].mxu0 %v1490
        %v1529 = vpop.f32.mrb[0].mxu0
        %v1530 = vadd.f32 %v1462, %v1529
        %v1531 = vpop.f32.mrb[0].mxu0
        %v1532 = vadd.f32 %v1462, %v1531
        %v1533 = vpop.f32.mrb[0].mxu0
        %v1534 = vadd.f32 %v1467, %v1533
        %v1535 = vpop.f32.mrb[0].mxu0
        %v1536 = vadd.f32 %v1467, %v1535
        %1537 = vmatprep.mubr.bf16.mxu0 0
        %1538 = vmatmul.mubr.bf16.gmra.mrb[0].mxu0 %v1493
        %v1539 = vpop.f32.mrb[0].mxu0
        %v1540 = vadd.f32 %v1472, %v1539
        %v1541 = vpop.f32.mrb[0].mxu0
        %v1542 = vadd.f32 %v1472, %v1541
        %v1543 = vpop.f32.mrb[0].mxu0
        %v1544 = vadd.f32 %v1477, %v1543
        %v1545 = vpop.f32.mrb[0].mxu0
        %v1546 = vadd.f32 %v1477, %v1545
        %1547 = vdwg.mxu0
        %s1548 = scalar_lea.vmem %s4, 64
        %v1549 = vld [vmem:[%s1548] sm:$0xf]
        %v1550 = vld [vmem:[%s1548 + $0x4] sm:$0xf]
        %v1551 = vld [vmem:[%s1548 + $0x8] sm:$0xf]
        %v1552 = vld [vmem:[%s1548 + $0xc] sm:$0xf]
        %v1553 = vmax.f32 %v1530, 0.0
        %v1554 = vmax.f32 %v1532, 0.0
        %v1555 = vmax.f32 %v1534, 0.0
        %v1556 = vmax.f32 %v1536, 0.0
        %v1557 = vmax.f32 %v1540, 0.0
        %v1558 = vmax.f32 %v1542, 0.0
        %v1559 = vmax.f32 %v1544, 0.0
        %v1560 = vmax.f32 %v1546, 0.0
        %v1561 = vpack.c.bf16 %v1555, %v1553
        %v1562 = vpack.c.bf16 %v1556, %v1554
        %v1563 = vpack.c.bf16 %v1559, %v1557
        %v1564 = vpack.c.bf16 %v1560, %v1558
        %s1565 = scalar_lea.vmem %s5, 128
        %v1566 = vld [vmem:[%s1565] sm:$0xff]
        %v1567 = vld [vmem:[%s1565 + $0x8] sm:$0xff]
        %v1568 = vld [vmem:[%s1565 + $0x10] sm:$0xff]
        %v1569 = vld [vmem:[%s1565 + $0x18] sm:$0xff]
        %1571 = vset.pattern.permute.xlu0 0
        %1572 = vperm.xlu0 %1571, %v1566
        %v1573 = vpop.permute.xlu0 %1572
        %1576 = vset.pattern.permute.xlu0 0
        %1577 = vperm.xlu0 %1576, %v1567
        %v1578 = vpop.permute.xlu0 %1577
        %1581 = vset.pattern.permute.xlu0 0
        %1582 = vperm.xlu0 %1581, %v1568
        %v1583 = vpop.permute.xlu0 %1582
        %1586 = vset.pattern.permute.xlu0 0
        %1587 = vperm.xlu0 %1586, %v1569
        %v1588 = vpop.permute.xlu0 %1587
        %v1594 = vunpack.c.l.b16 %v1549
        %v1595 = vunpack.c.l.b16 %v1550
        %v1596 = vunpack.c.l.b16 %v1551
        %v1597 = vunpack.c.l.b16 %v1552
        %v1598 = vpack.c.b16 %v1595, %v1594
        %v1599 = vpack.c.b16 %v1597, %v1596
        %v1601 = vsel %vm438, %v1598, 0
        %v1604 = vsel %vm438, %v1599, 0
        %1606 = vmatprep.subr.bf16.mxu0 %v1562
        %1607 = vmatpush1.bf16.msra.mxu0 %v1561
        %1608 = vmatprep.subr.bf16.mxu0 %v1564
        %1609 = vmatpush1.bf16.msra.mxu0 %v1563
        %1610 = vmatprep.subr.bf16.mxu0 0
        %1611 = vmatpush1.bf16.msra.mxu0 0
        %1612 = vmatprep.subr.bf16.mxu0 0
        %1613 = vmatpush1.bf16.msra.mxu0 0
        %1614 = vmatprep.subr.bf16.mxu0 0
        %1615 = vmatpush1.bf16.msra.mxu0 0
        %1616 = vmatprep.subr.bf16.mxu0 0
        %1617 = vmatpush1.bf16.msra.mxu0 0
        %1618 = vmatprep.subr.bf16.mxu0 0
        %1619 = vmatpush1.bf16.msra.mxu0 0
        %1620 = vmatprep.subr.bf16.mxu0 0
        %1621 = vmatpush1.bf16.msra.mxu0 0
        %1622 = vmatprep.subr.bf16.mxu0 0
        %1623 = vmatpush1.bf16.msra.mxu0 0
        %1624 = vmatprep.subr.bf16.mxu0 0
        %1625 = vmatpush1.bf16.msra.mxu0 0
        %1626 = vmatprep.subr.bf16.mxu0 0
        %1627 = vmatpush1.bf16.msra.mxu0 0
        %1628 = vmatprep.subr.bf16.mxu0 0
        %1629 = vmatpush1.bf16.msra.mxu0 0
        %1630 = vmatprep.subr.bf16.mxu0 0
        %1631 = vmatpush1.bf16.msra.mxu0 0
        %1632 = vmatprep.subr.bf16.mxu0 0
        %1633 = vmatpush1.bf16.msra.mxu0 0
        %1634 = vmatprep.subr.bf16.mxu0 0
        %1635 = vmatpush1.bf16.msra.mxu0 0
        %1636 = vmatprep.subr.bf16.mxu0 0
        %1637 = vmatpush1.bf16.msra.mxu0 0
        %1638 = vmatprep.mubr.bf16.mxu0 0
        %1639 = vmatmul.mubr.bf16.gmra.mrb[0].mxu0 %v1601
        %v1640 = vpop.f32.mrb[0].mxu0
        %v1641 = vadd.f32 %v1573, %v1640
        %v1642 = vpop.f32.mrb[0].mxu0
        %v1643 = vadd.f32 %v1573, %v1642
        %v1644 = vpop.f32.mrb[0].mxu0
        %v1645 = vadd.f32 %v1578, %v1644
        %v1646 = vpop.f32.mrb[0].mxu0
        %v1647 = vadd.f32 %v1578, %v1646
        %1648 = vmatprep.mubr.bf16.mxu0 0
        %1649 = vmatmul.mubr.bf16.gmra.mrb[0].mxu0 %v1604
        %v1650 = vpop.f32.mrb[0].mxu0
        %v1651 = vadd.f32 %v1583, %v1650
        %v1652 = vpop.f32.mrb[0].mxu0
        %v1653 = vadd.f32 %v1583, %v1652
        %v1654 = vpop.f32.mrb[0].mxu0
        %v1655 = vadd.f32 %v1588, %v1654
        %v1656 = vpop.f32.mrb[0].mxu0
        %v1657 = vadd.f32 %v1588, %v1656
        %1658 = vdwg.mxu0
        %v1659 = vadd.f32 %v1429, %v1641
        %v1660 = vadd.f32 %v1430, %v1643
        %v1661 = vadd.f32 %v1431, %v1645
        %v1662 = vadd.f32 %v1432, %v1647
        %v1663 = vadd.f32 %v1433, %v1651
        %v1664 = vadd.f32 %v1434, %v1653
        %v1665 = vadd.f32 %v1435, %v1655
        %v1666 = vadd.f32 %v1436, %v1657
        %v1667 = vld [vmem:[%s6] sm:$0x1]
        %v1668 = vmax.f32 %v1659, 0.0
        %v1669 = vmax.f32 %v1660, 0.0
        %v1670 = vmax.f32 %v1661, 0.0
        %v1671 = vmax.f32 %v1662, 0.0
        %v1672 = vmax.f32 %v1663, 0.0
        %v1673 = vmax.f32 %v1664, 0.0
        %v1674 = vmax.f32 %v1665, 0.0
        %v1675 = vmax.f32 %v1666, 0.0
        %v1676 = vpack.c.bf16 %v1670, %v1668
        %v1677 = vpack.c.bf16 %v1671, %v1669
        %v1678 = vpack.c.bf16 %v1674, %v1672
        %v1679 = vpack.c.bf16 %v1675, %v1673
        %v1680 = vld [vmem:[#allocation2] sm:$0x1]
        %1682 = vset.pattern.permute.xlu0 0
        %1683 = vperm.xlu0 %1682, %v1680
        %v1684 = vpop.permute.xlu0 %1683
        %v1686 = vlaneseq
        %v1687 = vshrl.u32 %v1686, 7
        %v1688 = vsub.s32 0, %v1687
        %v1689 = vrot.slane %v1684, %v1688
        %v1691 = vsel %vm438, %v1667, 0
        %1693 = vmatprep.subr.bf16.mxu0 %v1677
        %1694 = vmatpush1.bf16.msra.mxu0 %v1676
        %1695 = vmatprep.subr.bf16.mxu0 %v1679
        %1696 = vmatpush1.bf16.msra.mxu0 %v1678
        %1697 = vmatprep.subr.bf16.mxu0 0
        %1698 = vmatpush1.bf16.msra.mxu0 0
        %1699 = vmatprep.subr.bf16.mxu0 0
        %1700 = vmatpush1.bf16.msra.mxu0 0
        %1701 = vmatprep.subr.bf16.mxu0 0
        %1702 = vmatpush1.bf16.msra.mxu0 0
        %1703 = vmatprep.subr.bf16.mxu0 0
        %1704 = vmatpush1.bf16.msra.mxu0 0
        %1705 = vmatprep.subr.bf16.mxu0 0
        %1706 = vmatpush1.bf16.msra.mxu0 0
        %1707 = vmatprep.subr.bf16.mxu0 0
        %1708 = vmatpush1.bf16.msra.mxu0 0
        %1709 = vmatprep.subr.bf16.mxu0 0
        %1710 = vmatpush1.bf16.msra.mxu0 0
        %1711 = vmatprep.subr.bf16.mxu0 0
        %1712 = vmatpush1.bf16.msra.mxu0 0
        %1713 = vmatprep.subr.bf16.mxu0 0
        %1714 = vmatpush1.bf16.msra.mxu0 0
        %1715 = vmatprep.subr.bf16.mxu0 0
        %1716 = vmatpush1.bf16.msra.mxu0 0
        %1717 = vmatprep.subr.bf16.mxu0 0
        %1718 = vmatpush1.bf16.msra.mxu0 0
        %1719 = vmatprep.subr.bf16.mxu0 0
        %1720 = vmatpush1.bf16.msra.mxu0 0
        %1721 = vmatprep.subr.bf16.mxu0 0
        %1722 = vmatpush1.bf16.msra.mxu0 0
        %1723 = vmatprep.subr.bf16.mxu0 0
        %1724 = vmatpush1.bf16.msra.mxu0 0
        %1725 = vmatprep.mubr.bf16.mxu0 0
        %1726 = vmatmul.mubr.bf16.gmra.mrb[0].mxu0 %v1691
        %v1727 = vpop.f32.mrb[0].mxu0
        %v1728 = vadd.f32 %v1689, %v1727
        %v1729 = vpop.f32.mrb[0].mxu0
        %v1730 = vadd.f32 %v1689, %v1729
        %v1731 = vpop.f32.mrb[0].mxu0
        %v1732 = vpop.f32.mrb[0].mxu0
        %1733 = vdwg.mxu0
        %v1736 = vcombine.low %v1728, %v1730
        %v1738 = vunpack.c.l.s4 1966171168
        %v1739 = vunpack.c.0.s8 %v1738
        %v1740 = vlaneseq
        %v1741 = vshrl.u32 %v1740, 7
        %v1742 = vsub.s32 %v1739, %v1741
        %v1743 = vrot.slane %v1736, %v1742
        %v1745 = vunpack.c.l.s4 1966171168
        %v1746 = vunpack.c.0.s8 %v1745
        %v1747 = vlaneseq
        %v1748 = vshrl.u32 %v1747, 7
        %v1749 = vsub.s32 %v1746, %v1748
        %v1750 = vrot.slane %v1743, %v1749
        %v1752 = vlaneseq
        %vm1753 = vcmp.ge.s32.totalorder %v1752, 0
        %vm1754 = vcmp.lt.s32.totalorder %v1752, 256
        %vm1755 = vmand %vm1753, %vm1754
        %1756 = vst.msk [vmem:[%s330] sm:$0x3] %vm1755, %v1750
        %s1757 = sand.u32 %s224, 1
        %s1758 = scalar_lea.sflag [#allocation4], %s1757
        %s1759 = sand.u32 %s224, 1
        %s1760 = smul.addr %s1759, 2
        %s1761 = scalar_lea.vmem [#allocation3], %s1760
        // Predicated region
        $region53: #{tpu_custom_call.1} parent=51 // pred_check
          %p1762 = pneg %p234
        $region54: #{tpu_custom_call.1} parent=51 // pred_check_branch
          %1764 = sbr.rel (%p1762) target = $region56
        $region55: #{tpu_custom_call.1} parent=51 // pred_region
          %s1765 = smul.u32 2, %s28
          %s1767 = ssub.s32 32, 32
          %1768 = vsyncadd %s1758, %s1767
          %s1769 = smul.addr %s29, 2
          %s1770 = sadd.s32 %s1765, %s1769
          %s1771 = smul.addr %s1770, 16
          %s1772 = scalar_lea.hbm %s8, %s1771
          %s1774 = sshll.u32 %s1761, 4
          %s1775 = int_to_ptr.vmem [resolvable:$true] %s1774
          %1777 = dma.vmem_to_hbm [thread:$0]  %s1775, 32, %s1772, %s1758
        $region56: #{tpu_custom_call.1} parent=51 // pred_fallthru
          _
      $region52: #{tpu_custom_call.1} parent=5 // pred_fallthru
        _
      %p1778 = scmp.le.s32.totalorder 2, %s19
      // Predicated region
      $region57: #{tpu_custom_call.1} parent=5 // pred_check
        %p1779 = pneg %p1778
      $region58: #{tpu_custom_call.1} parent=5 // pred_check_branch
        %1781 = sbr.rel (%p1779) target = $region60
      $region59: #{tpu_custom_call.1} parent=5 // pred_region
        %s1782 = ssub.s32 %s19, 2
        // Predicated region
        $region61: #{tpu_custom_call.1} parent=59 // pred_check
          %p1783 = pneg %p240
        $region62: #{tpu_custom_call.1} parent=59 // pred_check_branch
          %1785 = sbr.rel (%p1783) target = $region64
        $region63: #{tpu_custom_call.1} parent=59 // pred_region
          %s1786 = sand.u32 %s225, 1
          %s1787 = scalar_lea.sflag [#allocation4], %s1786
          %s1788 = sand.u32 %s225, 1
          %s1789 = smul.addr %s1788, 2
          %s1790 = scalar_lea.vmem [#allocation3], %s1789
          %1791 = dma.done %s1787, 32
        $region64: #{tpu_custom_call.1} parent=59 // pred_fallthru
          _
      $region60: #{tpu_custom_call.1} parent=5 // pred_fallthru
        _
    $region6: #{tpu_custom_call.1} parent=1 // loop_footer
      %s23 = sadd.s32 1, %s19
    $region7: #{tpu_custom_call.1} parent=1 // loop_footer_branch
      %18 = sbr.rel target = $region3
    $region8: #{tpu_custom_call.1} parent=1 // loop_exit
      _
    %1792 = vsyncpa [#allocation4], 1
    %s1793 = scalar_lea.sflag [#allocation4], 1
    %1794 = vsyncpa %s1793, 1

</llo_original>
